<compile_context>
chip_gen: v5e
topology: v5e:2x2
jax: 0.10.0
libtpu: 0.0.40
codegen_flags: <defaults>
</compile_context>

<pallas_src>
import functools

import jax
import jax.numpy as jnp
from jax import lax
from jax.experimental import pallas as pl
from jax.experimental.pallas import tpu as pltpu

_LN_EPS = 1e-5  # PyTorch nn.LayerNorm default


def _band_kernel(x_ref, gamma_ref, beta_ref, w_ref, bias_ref, *rest):
    """One (band k, batch b) grid step.

    x_ref     : (D, T)  f32  one band's slab for one batch element
    gamma_ref : (D, T)  f32  LayerNorm gamma (normalized_shape = (D, T))
    beta_ref  : (D, T)  f32  LayerNorm beta
    w_ref     : (fc, D)      nn.Linear weight, PyTorch layout (bf16 or f32)
    bias_ref  : (1, fc) f32  nn.Linear bias
    rest      : (..., o_ref) -- o_ref: (T, fc).  An optional leading entry is
                the aliased full-output HBM ref (earlier groups' results); it
                is never touched here.
    """
    o_ref = rest[-1]

    x = x_ref[...].astype(jnp.float32)
    n = x.shape[0] * x.shape[1]

    # One-pass LayerNorm statistics over the whole (D, T) slab (review: drop
    # the separate mean / centered / squared slab passes and their temps).
    s1 = jnp.sum(x)
    s2 = jnp.sum(x * x)
    mu = s1 * (1.0 / n)
    var = s2 * (1.0 / n) - mu * mu
    inv = lax.rsqrt(var + _LN_EPS)

    # Single fused normalize + affine pass.
    xn = (x - mu) * inv * gamma_ref[...] + beta_ref[...]

    # Fused "transpose(-1,-2) + Linear": contract D (dim 0 of xn, dim 1 of W)
    # -> (T, fc).  Neither x^T nor W^T is materialized in HBM; Mosaic picks the
    # cheaper operand to re-layout for the MXU.  Operands in w's dtype
    # (bf16 by default), f32 accumulation.
    w = w_ref[...]
    y = lax.dot_general(
        xn.astype(w.dtype), w,
        dimension_numbers=(((0,), (1,)), ((), ())),
        preferred_element_type=jnp.float32)

    o_ref[...] = (y + bias_ref[...]).astype(o_ref.dtype)


def _group_call(x_g, gamma_g, beta_g, w_g, bias_g, k0, k_total, out_prev):
    """Run all bands of one equal-bandwidth group in a single pallas_call.

    x_g     : (B, Kg, D, T)   slabs
    gamma_g : (Kg, D, T)      LayerNorm gammas
    beta_g  : (Kg, D, T)      LayerNorm betas
    w_g     : (Kg, fc, D)     Linear weights (PyTorch layout)
    bias_g  : (Kg, 1, fc)     Linear biases
    k0      : first global band index of this group
    out_prev: None, or the (B, k_total, T, fc) buffer holding earlier groups'
              results; it is aliased to this call's output so all groups write
              into one stacked result (no jnp.stack / concatenate pass).
    """
    B, Kg, D, T = x_g.shape
    fc = w_g.shape[1]
    out_dtype = x_g.dtype

    in_specs = [
        pl.BlockSpec((None, None, D, T), lambda k, b: (b, k, 0, 0)),  # x slab
        pl.BlockSpec((None, D, T), lambda k, b: (k, 0, 0)),           # gamma
        pl.BlockSpec((None, D, T), lambda k, b: (k, 0, 0)),           # beta
        pl.BlockSpec((None, fc, D), lambda k, b: (k, 0, 0)),          # W
        pl.BlockSpec((None, 1, fc), lambda k, b: (k, 0, 0)),          # bias
    ]
    args = [x_g, gamma_g, beta_g, w_g, bias_g]
    io_aliases = {}
    if out_prev is not None:
        # Earlier groups' output buffer: passed as an (unused) ANY-space input
        # and aliased to this call's output, so its blocks are preserved and
        # this group's blocks are written in place.
        in_specs.append(pl.BlockSpec(memory_space=pl.ANY))
        args.append(out_prev)
        io_aliases = {len(args) - 1: 0}

    flops = 2 * B * Kg * T * D * fc + 8 * B * Kg * D * T
    bytes_accessed = (
        x_g.size * x_g.dtype.itemsize
        + gamma_g.size * gamma_g.dtype.itemsize
        + beta_g.size * beta_g.dtype.itemsize
        + w_g.size * w_g.dtype.itemsize
        + bias_g.size * bias_g.dtype.itemsize
        + B * Kg * T * fc * jnp.dtype(out_dtype).itemsize)

    return pl.pallas_call(
        _band_kernel,
        out_shape=jax.ShapeDtypeStruct((B, k_total, T, fc), out_dtype),
        grid_spec=pltpu.PrefetchScalarGridSpec(
            num_scalar_prefetch=0,
            # b innermost: per-band params keep the same block index across the
            # batch, so Pallas fetches them once per band; the band axis is
            # outermost so v7x's two TensorCores can shard bands.
            grid=(Kg, B),
            in_specs=in_specs,
            out_specs=pl.BlockSpec((None, None, T, fc),
                                   lambda k, b: (b, k0 + k, 0, 0)),
        ),
        input_output_aliases=io_aliases,
        compiler_params=pltpu.CompilerParams(
            dimension_semantics=("parallel", "parallel"),
            vmem_limit_bytes=48 * 1024 * 1024),
        cost_estimate=pl.CostEstimate(
            flops=flops, transcendentals=B * Kg, bytes_accessed=bytes_accessed),
    )(*args)


def _group_bands(bandwidth_indices):
    """Group consecutive, frequency-contiguous bands of equal bandwidth."""
    groups = []  # (start_bin, end_bin, bandwidth, first_band_index, n_bands)
    for i, (s, e) in enumerate(bandwidth_indices):
        bw = e - s
        if groups and groups[-1][2] == bw and groups[-1][1] == s:
            ps, _, pbw, pk0, pn = groups[-1]
            groups[-1] = (ps, e, pbw, pk0, pn + 1)
        else:
            groups.append((s, e, bw, i, 1))
    return groups


def bandsplit_forward(x, band_params, bandwidth_indices,
                      matmul_dtype=jnp.bfloat16):
    """BandSplitModule.forward.

    x                 : (B, C, F, T), complex64 (cac path) or float32
    band_params       : list of (gamma (D_i,T), beta (D_i,T), W (fc,D_i), b (fc,))
    bandwidth_indices : list of (start, end) frequency-bin indices
    returns           : (B, K, T, fc)
    """
    B, C, F, T = x.shape
    K = len(bandwidth_indices)
    complex_in = jnp.iscomplexobj(x)
    cmul = 2 if complex_in else 1
    fc = band_params[0][2].shape[0]

    out = None
    for (s, e, bw, k0, kg) in _group_bands(bandwidth_indices):
        D = bw * C * cmul
        # Build this group's (B, Kg, D, T) slabs straight from the raw input;
        # view_as_real / permute / band-slice / reshape fuse into one XLA copy,
        # so no intermediate (B, C*2, F, T) spectrogram or per-band slab is
        # materialized separately in HBM.
        xs = x[:, :, s:e, :]
        if complex_in:
            xg = jnp.stack([jnp.real(xs), jnp.imag(xs)], axis=2)  # (B,C,2,Fg,T)
            xg = xg.reshape(B, C, 2, kg, bw, T)
            xg = jnp.transpose(xg, (0, 3, 1, 2, 4, 5))            # (B,Kg,C,2,bw,T)
        else:
            xg = xs.reshape(B, C, kg, bw, T)
            xg = jnp.transpose(xg, (0, 2, 1, 3, 4))               # (B,Kg,C,bw,T)
        xg = xg.reshape(B, kg, D, T)

        pars = band_params[k0:k0 + kg]
        gamma_g = jnp.stack([p[0] for p in pars]).astype(jnp.float32)
        beta_g = jnp.stack([p[1] for p in pars]).astype(jnp.float32)
        w_g = jnp.stack([p[2] for p in pars]).astype(matmul_dtype)
        bias_g = jnp.stack([p[3] for p in pars]).reshape(kg, 1, fc)
        bias_g = bias_g.astype(jnp.float32)

        out = _group_call(xg, gamma_g, beta_g, w_g, bias_g, k0, K, out)
    return out


def bandsplit_reference(x, band_params, bandwidth_indices):
    """Pure-JAX reference mirroring the PyTorch module."""
    B, C, F, T = x.shape
    if jnp.iscomplexobj(x):
        xr = jnp.stack([jnp.real(x), jnp.imag(x)], axis=2).reshape(B, C * 2, F, T)
    else:
        xr = x
    outs = []
    for (s, e), (gamma, beta, w, b) in zip(bandwidth_indices, band_params):
        sub = xr[:, :, s:e, :].reshape(B, -1, T)
        mu = jnp.mean(sub, axis=(1, 2), keepdims=True)
        var = jnp.mean((sub - mu) ** 2, axis=(1, 2), keepdims=True)
        xn = (sub - mu) / jnp.sqrt(var + _LN_EPS) * gamma[None] + beta[None]
        y = jnp.einsum("bdt,fd->btf", xn, w) + b
        outs.append(y)
    return jnp.stack(outs, axis=1)


if __name__ == "__main__":
    key = jax.random.PRNGKey(0)

    # Small shapes consistent with the module: stereo complex STFT input.
    # T is a multiple of 128 so the (D, T) slabs and (T, fc) outputs are
    # lane-dense (review item).
    B, C, F, T = 2, 2, 16, 128
    FC = 128                                  # fc_dim (module default)
    freq_mul = 2 * C                          # complex_as_channel * stereo = 4
    # What freq2bands(bandsplits, sr, n_fft) would produce for this F:
    # -> two groups: {bw=4: 1 band}, {bw=6: 2 bands}.
    bandwidth_indices = [(0, 4), (4, 10), (10, 16)]
    K = len(bandwidth_indices)

    kx_re, kx_im, kp = jax.random.split(key, 3)
    x = lax.complex(
        jax.random.normal(kx_re, (B, C, F, T), dtype=jnp.float32),
        jax.random.normal(kx_im, (B, C, F, T), dtype=jnp.float32))

    # Deterministic synthetic per-band LayerNorm + Linear parameters.
    band_params = []
    for i, (s, e) in enumerate(bandwidth_indices):
        D = (e - s) * freq_mul
        kg_, kb_, kw_, kbias_ = jax.random.split(jax.random.fold_in(kp, i), 4)
        gamma = 1.0 + 0.1 * jax.random.normal(kg_, (D, T), dtype=jnp.float32)
        beta = 0.1 * jax.random.normal(kb_, (D, T), dtype=jnp.float32)
        w = jax.random.normal(kw_, (FC, D), dtype=jnp.float32) / jnp.sqrt(D)
        b = 0.1 * jax.random.normal(kbias_, (FC,), dtype=jnp.float32)
        band_params.append((gamma, beta, w, b))

    fwd_f32 = jax.jit(functools.partial(
        bandsplit_forward, bandwidth_indices=bandwidth_indices,
        matmul_dtype=jnp.float32))
    fwd_bf16 = jax.jit(functools.partial(
        bandsplit_forward, bandwidth_indices=bandwidth_indices,
        matmul_dtype=jnp.bfloat16))

    ref = bandsplit_reference(x, band_params, bandwidth_indices)

    # f32 matmul path: tight agreement with the reference.
    out32 = jax.block_until_ready(fwd_f32(x, band_params))
    assert out32.shape == (B, K, T, FC), out32.shape
    assert jnp.allclose(out32, ref, atol=1e-3, rtol=1e-3), float(
        jnp.max(jnp.abs(out32 - ref)))

    # Default bf16-MXU path (f32 accumulate): looser tolerance, as flagged in
    # the review.
    out16 = jax.block_until_ready(fwd_bf16(x, band_params))
    assert out16.shape == (B, K, T, FC), out16.shape
    assert jnp.allclose(out16, ref, atol=5e-2, rtol=5e-2), float(
        jnp.max(jnp.abs(out16 - ref)))

    # TODO(synk): gc.collect()/torch.cuda.empty_cache() in the torch forward
    # have no (and need no) JAX/Pallas equivalent.
    print("KERNEL_OK")
</pallas_src>

<mosaic_0001>
module attributes {stable_mosaic.version = 11 : i64} {
  func.func @_band_kernel(%arg0: i32, %arg1: i32, %arg2: memref<1x1x16x128xf32, #tpu.memory_space<vmem>>, %arg3: memref<1x16x128xf32, #tpu.memory_space<vmem>>, %arg4: memref<1x16x128xf32, #tpu.memory_space<vmem>>, %arg5: memref<1x128x16xf32, #tpu.memory_space<vmem>>, %arg6: memref<1x1x128xf32, #tpu.memory_space<vmem>>, %arg7: memref<1x1x128x128xf32, #tpu.memory_space<vmem>>) attributes {dimension_semantics = [#tpu.dimension_semantics<parallel>, #tpu.dimension_semantics<parallel>], iteration_bounds = array<i64: 1, 2>, scalar_prefetch = 0 : i64, scratch_operands = 0 : i64, tpu.core_type = #tpu.core_type<tc>, window_params = [{transform_indices = @transform_0, window_bounds = array<i64: 1, 1, 16, 128>}, {transform_indices = @transform_1, window_bounds = array<i64: 1, 16, 128>}, {transform_indices = @transform_2, window_bounds = array<i64: 1, 16, 128>}, {transform_indices = @transform_3, window_bounds = array<i64: 1, 128, 16>}, {transform_indices = @transform_4, window_bounds = array<i64: 1, 1, 128>}, {transform_indices = @transform_5, window_bounds = array<i64: 1, 1, 128, 128>}]} {
    %c0 = arith.constant 0 : index
    %c0_0 = arith.constant 0 : index
    %c0_1 = arith.constant 0 : index
    %c0_2 = arith.constant 0 : index
    %0 = vector.load %arg2[%c0, %c0_0, %c0_1, %c0_2] : memref<1x1x16x128xf32, #tpu.memory_space<vmem>>, vector<1x1x16x128xf32>
    %1 = vector.shape_cast %0 : vector<1x1x16x128xf32> to vector<16x128xf32>
    %2 = vector.shape_cast %1 : vector<16x128xf32> to vector<1x16x128xf32>
    %cst = arith.constant dense<0.000000e+00> : vector<1xf32>
    %3 = vector.multi_reduction <add>, %2, %cst [1, 2] : vector<1x16x128xf32> to vector<1xf32>
    %4 = vector.shape_cast %3 : vector<1xf32> to vector<1x1x1xf32>
    %5 = vector.extract %4[0, 0, 0] : f32 from vector<1x1x1xf32>
    %6 = arith.mulf %1, %1 : vector<16x128xf32>
    %7 = vector.shape_cast %6 : vector<16x128xf32> to vector<1x16x128xf32>
    %cst_3 = arith.constant dense<0.000000e+00> : vector<1xf32>
    %8 = vector.multi_reduction <add>, %7, %cst_3 [1, 2] : vector<1x16x128xf32> to vector<1xf32>
    %9 = vector.shape_cast %8 : vector<1xf32> to vector<1x1x1xf32>
    %10 = vector.extract %9[0, 0, 0] : f32 from vector<1x1x1xf32>
    %cst_4 = arith.constant 4.8828125E-4 : f32
    %11 = arith.mulf %5, %cst_4 : f32
    %cst_5 = arith.constant 4.8828125E-4 : f32
    %12 = arith.mulf %10, %cst_5 : f32
    %13 = arith.mulf %11, %11 : f32
    %14 = arith.subf %12, %13 : f32
    %cst_6 = arith.constant 9.99999974E-6 : f32
    %15 = arith.addf %14, %cst_6 : f32
    %16 = math.rsqrt %15 : f32
    %17 = vector.broadcast %11 : f32 to vector<16x128xf32>
    %18 = arith.subf %1, %17 : vector<16x128xf32>
    %19 = vector.broadcast %16 : f32 to vector<16x128xf32>
    %20 = arith.mulf %18, %19 : vector<16x128xf32>
    %c0_7 = arith.constant 0 : index
    %c0_8 = arith.constant 0 : index
    %c0_9 = arith.constant 0 : index
    %21 = vector.load %arg3[%c0_7, %c0_8, %c0_9] : memref<1x16x128xf32, #tpu.memory_space<vmem>>, vector<1x16x128xf32>
    %22 = vector.shape_cast %21 : vector<1x16x128xf32> to vector<16x128xf32>
    %23 = arith.mulf %20, %22 : vector<16x128xf32>
    %c0_10 = arith.constant 0 : index
    %c0_11 = arith.constant 0 : index
    %c0_12 = arith.constant 0 : index
    %24 = vector.load %arg4[%c0_10, %c0_11, %c0_12] : memref<1x16x128xf32, #tpu.memory_space<vmem>>, vector<1x16x128xf32>
    %25 = vector.shape_cast %24 : vector<1x16x128xf32> to vector<16x128xf32>
    %26 = arith.addf %23, %25 : vector<16x128xf32>
    %c0_13 = arith.constant 0 : index
    %c0_14 = arith.constant 0 : index
    %c0_15 = arith.constant 0 : index
    %27 = vector.load %arg5[%c0_13, %c0_14, %c0_15] : memref<1x128x16xf32, #tpu.memory_space<vmem>>, vector<1x128x16xf32>
    %28 = vector.shape_cast %27 : vector<1x128x16xf32> to vector<128x16xf32>
    %cst_16 = arith.constant dense<0.000000e+00> : vector<128x128xf32>
    %29 = tpu.matmul %26, %28, %cst_16 {dimension_numbers = #tpu.dot_dimension_numbers<[0], [1], [1], [0], [0, 1, 1, 0], [], []>} : vector<16x128xf32>, vector<128x16xf32>, vector<128x128xf32> -> vector<128x128xf32>
    %c0_17 = arith.constant 0 : index
    %c0_18 = arith.constant 0 : index
    %c0_19 = arith.constant 0 : index
    %30 = vector.load %arg6[%c0_17, %c0_18, %c0_19] : memref<1x1x128xf32, #tpu.memory_space<vmem>>, vector<1x1x128xf32>
    %31 = vector.shape_cast %30 : vector<1x1x128xf32> to vector<1x128xf32>
    %32 = vector.broadcast %31 : vector<1x128xf32> to vector<128x128xf32>
    %33 = arith.addf %29, %32 : vector<128x128xf32>
    %c0_20 = arith.constant 0 : index
    %c0_21 = arith.constant 0 : index
    %c0_22 = arith.constant 0 : index
    %c0_23 = arith.constant 0 : index
    %34 = vector.load %arg7[%c0_20, %c0_21, %c0_22, %c0_23] : memref<1x1x128x128xf32, #tpu.memory_space<vmem>>, vector<1x1x128x128xf32>
    %35 = vector.shape_cast %34 : vector<1x1x128x128xf32> to vector<128x128xf32>
    %36 = vector.shape_cast %33 : vector<128x128xf32> to vector<1x1x128x128xf32>
    tpu.vector_store %arg7[%c0_20, %c0_21, %c0_22, %c0_23], %36 {strides = array<i32>} : memref<1x1x128x128xf32, #tpu.memory_space<vmem>>, vector<1x1x128x128xf32>,
    return
  }
  func.func @transform_0(%arg0: i32, %arg1: i32) -> (i32, i32, i32, i32) {
    %c0_i32 = arith.constant 0 : i32
    %c0_i32_0 = arith.constant 0 : i32
    %c0_i32_1 = arith.constant 0 : i32
    return %arg1, %arg0, %c0_i32, %c0_i32_0 : i32, i32, i32, i32
  }
  func.func @transform_1(%arg0: i32, %arg1: i32) -> (i32, i32, i32) {
    %c0_i32 = arith.constant 0 : i32
    %c0_i32_0 = arith.constant 0 : i32
    %c0_i32_1 = arith.constant 0 : i32
    return %arg0, %c0_i32, %c0_i32_0 : i32, i32, i32
  }
  func.func @transform_2(%arg0: i32, %arg1: i32) -> (i32, i32, i32) {
    %c0_i32 = arith.constant 0 : i32
    %c0_i32_0 = arith.constant 0 : i32
    %c0_i32_1 = arith.constant 0 : i32
    return %arg0, %c0_i32, %c0_i32_0 : i32, i32, i32
  }
  func.func @transform_3(%arg0: i32, %arg1: i32) -> (i32, i32, i32) {
    %c0_i32 = arith.constant 0 : i32
    %c0_i32_0 = arith.constant 0 : i32
    %c0_i32_1 = arith.constant 0 : i32
    return %arg0, %c0_i32, %c0_i32_0 : i32, i32, i32
  }
  func.func @transform_4(%arg0: i32, %arg1: i32) -> (i32, i32, i32) {
    %c0_i32 = arith.constant 0 : i32
    %c0_i32_0 = arith.constant 0 : i32
    %c0_i32_1 = arith.constant 0 : i32
    return %arg0, %c0_i32, %c0_i32_0 : i32, i32, i32
  }
  func.func @transform_5(%arg0: i32, %arg1: i32) -> (i32, i32, i32, i32) {
    %c0_i32 = arith.constant 0 : i32
    %0 = arith.addi %c0_i32, %arg0 : i32
    %c0_i32_0 = arith.constant 0 : i32
    %c0_i32_1 = arith.constant 0 : i32
    %c0_i32_2 = arith.constant 0 : i32
    return %arg1, %0, %c0_i32_0, %c0_i32_1 : i32, i32, i32, i32
  }
}

module attributes {stable_mosaic.version = 11 : i64} {
  func.func @_band_kernel(%arg0: i32, %arg1: i32, %arg2: memref<1x1x24x128xf32, #tpu.memory_space<vmem>>, %arg3: memref<1x24x128xf32, #tpu.memory_space<vmem>>, %arg4: memref<1x24x128xf32, #tpu.memory_space<vmem>>, %arg5: memref<1x128x24xf32, #tpu.memory_space<vmem>>, %arg6: memref<1x1x128xf32, #tpu.memory_space<vmem>>, %arg7: memref<2x3x128x128xf32, #tpu.memory_space<any>>, %arg8: memref<1x1x128x128xf32, #tpu.memory_space<vmem>>) attributes {dimension_semantics = [#tpu.dimension_semantics<parallel>, #tpu.dimension_semantics<parallel>], iteration_bounds = array<i64: 2, 2>, scalar_prefetch = 0 : i64, scratch_operands = 0 : i64, tpu.core_type = #tpu.core_type<tc>, window_params = [{transform_indices = @transform_0, window_bounds = array<i64: 1, 1, 24, 128>}, {transform_indices = @transform_1, window_bounds = array<i64: 1, 24, 128>}, {transform_indices = @transform_2, window_bounds = array<i64: 1, 24, 128>}, {transform_indices = @transform_3, window_bounds = array<i64: 1, 128, 24>}, {transform_indices = @transform_4, window_bounds = array<i64: 1, 1, 128>}, {}, {transform_indices = @transform_6, window_bounds = array<i64: 1, 1, 128, 128>}]} {
    %c0 = arith.constant 0 : index
    %c0_0 = arith.constant 0 : index
    %c0_1 = arith.constant 0 : index
    %c0_2 = arith.constant 0 : index
    %0 = vector.load %arg2[%c0, %c0_0, %c0_1, %c0_2] : memref<1x1x24x128xf32, #tpu.memory_space<vmem>>, vector<1x1x24x128xf32>
    %1 = vector.shape_cast %0 : vector<1x1x24x128xf32> to vector<24x128xf32>
    %2 = vector.shape_cast %1 : vector<24x128xf32> to vector<1x24x128xf32>
    %cst = arith.constant dense<0.000000e+00> : vector<1xf32>
    %3 = vector.multi_reduction <add>, %2, %cst [1, 2] : vector<1x24x128xf32> to vector<1xf32>
    %4 = vector.shape_cast %3 : vector<1xf32> to vector<1x1x1xf32>
    %5 = vector.extract %4[0, 0, 0] : f32 from vector<1x1x1xf32>
    %6 = arith.mulf %1, %1 : vector<24x128xf32>
    %7 = vector.shape_cast %6 : vector<24x128xf32> to vector<1x24x128xf32>
    %cst_3 = arith.constant dense<0.000000e+00> : vector<1xf32>
    %8 = vector.multi_reduction <add>, %7, %cst_3 [1, 2] : vector<1x24x128xf32> to vector<1xf32>
    %9 = vector.shape_cast %8 : vector<1xf32> to vector<1x1x1xf32>
    %10 = vector.extract %9[0, 0, 0] : f32 from vector<1x1x1xf32>
    %cst_4 = arith.constant 3.25520843E-4 : f32
    %11 = arith.mulf %5, %cst_4 : f32
    %cst_5 = arith.constant 3.25520843E-4 : f32
    %12 = arith.mulf %10, %cst_5 : f32
    %13 = arith.mulf %11, %11 : f32
    %14 = arith.subf %12, %13 : f32
    %cst_6 = arith.constant 9.99999974E-6 : f32
    %15 = arith.addf %14, %cst_6 : f32
    %16 = math.rsqrt %15 : f32
    %17 = vector.broadcast %11 : f32 to vector<24x128xf32>
    %18 = arith.subf %1, %17 : vector<24x128xf32>
    %19 = vector.broadcast %16 : f32 to vector<24x128xf32>
    %20 = arith.mulf %18, %19 : vector<24x128xf32>
    %c0_7 = arith.constant 0 : index
    %c0_8 = arith.constant 0 : index
    %c0_9 = arith.constant 0 : index
    %21 = vector.load %arg3[%c0_7, %c0_8, %c0_9] : memref<1x24x128xf32, #tpu.memory_space<vmem>>, vector<1x24x128xf32>
    %22 = vector.shape_cast %21 : vector<1x24x128xf32> to vector<24x128xf32>
    %23 = arith.mulf %20, %22 : vector<24x128xf32>
    %c0_10 = arith.constant 0 : index
    %c0_11 = arith.constant 0 : index
    %c0_12 = arith.constant 0 : index
    %24 = vector.load %arg4[%c0_10, %c0_11, %c0_12] : memref<1x24x128xf32, #tpu.memory_space<vmem>>, vector<1x24x128xf32>
    %25 = vector.shape_cast %24 : vector<1x24x128xf32> to vector<24x128xf32>
    %26 = arith.addf %23, %25 : vector<24x128xf32>
    %c0_13 = arith.constant 0 : index
    %c0_14 = arith.constant 0 : index
    %c0_15 = arith.constant 0 : index
    %27 = vector.load %arg5[%c0_13, %c0_14, %c0_15] : memref<1x128x24xf32, #tpu.memory_space<vmem>>, vector<1x128x24xf32>
    %28 = vector.shape_cast %27 : vector<1x128x24xf32> to vector<128x24xf32>
    %cst_16 = arith.constant dense<0.000000e+00> : vector<128x128xf32>
    %29 = tpu.matmul %26, %28, %cst_16 {dimension_numbers = #tpu.dot_dimension_numbers<[0], [1], [1], [0], [0, 1, 1, 0], [], []>} : vector<24x128xf32>, vector<128x24xf32>, vector<128x128xf32> -> vector<128x128xf32>
    %c0_17 = arith.constant 0 : index
    %c0_18 = arith.constant 0 : index
    %c0_19 = arith.constant 0 : index
    %30 = vector.load %arg6[%c0_17, %c0_18, %c0_19] : memref<1x1x128xf32, #tpu.memory_space<vmem>>, vector<1x1x128xf32>
    %31 = vector.shape_cast %30 : vector<1x1x128xf32> to vector<1x128xf32>
    %32 = vector.broadcast %31 : vector<1x128xf32> to vector<128x128xf32>
    %33 = arith.addf %29, %32 : vector<128x128xf32>
    %c0_20 = arith.constant 0 : index
    %c0_21 = arith.constant 0 : index
    %c0_22 = arith.constant 0 : index
    %c0_23 = arith.constant 0 : index
    %34 = vector.load %arg8[%c0_20, %c0_21, %c0_22, %c0_23] : memref<1x1x128x128xf32, #tpu.memory_space<vmem>>, vector<1x1x128x128xf32>
    %35 = vector.shape_cast %34 : vector<1x1x128x128xf32> to vector<128x128xf32>
    %36 = vector.shape_cast %33 : vector<128x128xf32> to vector<1x1x128x128xf32>
    tpu.vector_store %arg8[%c0_20, %c0_21, %c0_22, %c0_23], %36 {strides = array<i32>} : memref<1x1x128x128xf32, #tpu.memory_space<vmem>>, vector<1x1x128x128xf32>,
    return
  }
  func.func @transform_0(%arg0: i32, %arg1: i32) -> (i32, i32, i32, i32) {
    %c0_i32 = arith.constant 0 : i32
    %c0_i32_0 = arith.constant 0 : i32
    %c0_i32_1 = arith.constant 0 : i32
    return %arg1, %arg0, %c0_i32, %c0_i32_0 : i32, i32, i32, i32
  }
  func.func @transform_1(%arg0: i32, %arg1: i32) -> (i32, i32, i32) {
    %c0_i32 = arith.constant 0 : i32
    %c0_i32_0 = arith.constant 0 : i32
    %c0_i32_1 = arith.constant 0 : i32
    return %arg0, %c0_i32, %c0_i32_0 : i32, i32, i32
  }
  func.func @transform_2(%arg0: i32, %arg1: i32) -> (i32, i32, i32) {
    %c0_i32 = arith.constant 0 : i32
    %c0_i32_0 = arith.constant 0 : i32
    %c0_i32_1 = arith.constant 0 : i32
    return %arg0, %c0_i32, %c0_i32_0 : i32, i32, i32
  }
  func.func @transform_3(%arg0: i32, %arg1: i32) -> (i32, i32, i32) {
    %c0_i32 = arith.constant 0 : i32
    %c0_i32_0 = arith.constant 0 : i32
    %c0_i32_1 = arith.constant 0 : i32
    return %arg0, %c0_i32, %c0_i32_0 : i32, i32, i32
  }
  func.func @transform_4(%arg0: i32, %arg1: i32) -> (i32, i32, i32) {
    %c0_i32 = arith.constant 0 : i32
    %c0_i32_0 = arith.constant 0 : i32
    %c0_i32_1 = arith.constant 0 : i32
    return %arg0, %c0_i32, %c0_i32_0 : i32, i32, i32
  }
  func.func @transform_6(%arg0: i32, %arg1: i32) -> (i32, i32, i32, i32) {
    %c1_i32 = arith.constant 1 : i32
    %0 = arith.addi %c1_i32, %arg0 : i32
    %c0_i32 = arith.constant 0 : i32
    %c0_i32_0 = arith.constant 0 : i32
    %c0_i32_1 = arith.constant 0 : i32
    return %arg1, %0, %c0_i32, %c0_i32_0 : i32, i32, i32, i32
  }
}

</mosaic_0001>

<llo_original>
// kernel: custom-call.1
$region0: #{custom-call.1}
  %s0 = inlined_call_operand.hbm [shape: c64[2,2,16,128], index: 0, kind: input, shape index: {}]
  %s1 = inlined_call_operand.vmem [shape: f32[2,2,16,128], index: 1, kind: output, shape index: {}]
  %s2 = scalar_lea.hbm %s0, 64
  $region1: #{custom-call.1} parent=0
    #allocation0 [shape = 's32[1]{0}', space=sflag, size = 0x4, scoped, tag = 'scoped memory for custom-call.1']
    %3 = vsyncpa [#allocation0], 0
    %s5 = sshll.u32 %s2, 4
    %s6 = int_to_ptr.hbm [resolvable:$true] %s5
    %s7 = sshll.u32 %s1, 4
    %s8 = int_to_ptr.vmem [resolvable:$true] %s7
    %10 = dma.hbm_to_vmem [thread:$0]  %s6, 1024, %s8, [#allocation0]
    %12 = dma.done [#allocation0], 1024
    %13 = vsyncpa [#allocation0], 1

// kernel: custom-call
$region0: #{custom-call}
  %s0 = inlined_call_operand.hbm [shape: c64[2,2,16,128], index: 0, kind: input, shape index: {}]
  %s1 = inlined_call_operand.vmem [shape: f32[2,2,16,128], index: 1, kind: output, shape index: {}]
  $region1: #{custom-call} parent=0
    #allocation0 [shape = 's32[1]{0}', space=sflag, size = 0x4, scoped, tag = 'scoped memory for custom-call']
    %2 = vsyncpa [#allocation0], 0
    %s4 = sshll.u32 %s0, 4
    %s5 = int_to_ptr.hbm [resolvable:$true] %s4
    %s6 = sshll.u32 %s1, 4
    %s7 = int_to_ptr.vmem [resolvable:$true] %s6
    %9 = dma.hbm_to_vmem [thread:$0]  %s5, 1024, %s7, [#allocation0]
    %11 = dma.done [#allocation0], 1024
    %12 = vsyncpa [#allocation0], 1

// kernel: bandsplit_forward.2
$region0: #{bandsplit_forward.2}
  #allocation0 [shape = 'u32[]', space=smem, size = 0x4, offset = 0x4, fixed_abs, tag = 'smem constant byte address 0x4 - core index']
  #allocation1 [shape = 'u32[72,128]{1,0:T(1,128)}', space=vmem, size = 0x9000, scoped, tag = 'internal scratch']
  %s0 = inlined_call_operand.vmem [shape: f32[2,1,16,128], index: 0, kind: input, shape index: {}]
  %s1 = inlined_call_operand.vmem [shape: f32[1,16,128], index: 1, kind: input, shape index: {}]
  %s2 = inlined_call_operand.vmem [shape: f32[1,16,128], index: 2, kind: input, shape index: {}]
  %s3 = inlined_call_operand.vmem [shape: f32[1,128,16], index: 3, kind: input, shape index: {}]
  %s4 = inlined_call_operand.vmem [shape: f32[1,1,128], index: 4, kind: input, shape index: {}]
  %s5 = inlined_call_operand.hbm [shape: f32[2,3,128,128], index: 5, kind: output, shape index: {}]
  %s6 = sld [smem:[#allocation0]]
  $region53: #{bandsplit_forward.2} parent=0
    _
  %s8 = ssub.s32 1, %s6
  %s9 = scalar_select 0, %s8, %s6
  $region1: #{bandsplit_forward.2} parent=0
    #allocation2 [shape = 'u8[131072]{0}', space=vmem, size = 0x20000, scoped, tag = 'output window, operand 0']
    #allocation3 [shape = 's32[2]{0}', space=sflag, size = 0x8, scoped, tag = 'scoped memory for bandsplit_forward.2']
    %10 = vsyncpa [#allocation3], 0
    %s11 = scalar_lea.sflag [#allocation3], 1
    %12 = vsyncpa %s11, 0
    loop: start=0, step=1, limit=4
    $region2: #{bandsplit_forward.2} parent=1 // loop_pre_header
      _
    $region3: #{bandsplit_forward.2} parent=1 // loop_header
      %s14 = sphi 0, %s18
      %p15 = scmp.ge.s32.totalorder %s14, 4
      %s21 = sphi 0, %s33
      %s22 = sphi 0, %s29
      %s23 = sphi 0, %s21
      %s24 = sphi 0, %s22
      %s25 = sphi 0, %s23
      %s26 = sphi 0, %s24
      %s38 = sphi 0, %s40
      %s41 = sphi 0, %s38
      %s42 = sphi 0, %s41
      %s58 = sphi 0, %s42
      %s64 = sphi 0, %s66
      %s67 = sphi 0, %s64
      %s68 = sphi 0, %s67
      %s84 = sphi 0, %s68
      %s90 = sphi 0, %s92
      %s93 = sphi 0, %s90
      %s94 = sphi 0, %s93
      %s110 = sphi 0, %s94
      %s116 = sphi 0, %s118
      %s119 = sphi 0, %s116
      %s120 = sphi 0, %s119
      %s136 = sphi 0, %s120
      %s142 = sphi 0, %s144
      %s145 = sphi 0, %s142
      %s146 = sphi 0, %s145
      %s162 = sphi 0, %s146
      %s170 = sphi 0, %s172
      %s173 = sphi 0, %s170
      %s174 = sphi 0, %s173
      %s190 = sphi 0, %s174
    $region4: #{bandsplit_forward.2} parent=1 // loop_header_branch
      %17 = sbr.rel (%p15) target = $region8
    $region5: #{bandsplit_forward.2} parent=1 // loop_body
      %s19 = ssub.s32 %s14, 1
      %s20 = ssub.s32 %s14, 2
      %s27 = sadd.s32 1, %s22
      %p28 = scmp.ge.s32.totalorder %s27, 2
      %s29 = scalar_select %p28, 0, %s27
      %s30 = sadd.s32 1, %s21
      %s31 = scalar_select %p28, %s30, %s21
      %p32 = scmp.ge.s32.totalorder %s31, 1
      %s33 = scalar_select %p32, 0, %s31
      %s34 = ssub.s32 %s22, %s29
      %s35 = ssub.s32 %s21, %s33
      %s36 = sor.u32 %s34, %s35
      %p37 = scmp.eq.s32.totalorder %s36, 0
      %s39 = sadd.s32 %s38, 1
      %s40 = scalar_select %p37, %s38, %s39
      %p43 = pneg %p37
      %p44 = scmp.eq.s32.totalorder %s14, 1
      %p45 = por %p43, %p44
      %p46 = scmp.ne.s32.totalorder %s38, %s41
      %p47 = scmp.eq.s32.totalorder %s14, 0
      %p48 = por %p46, %p47
      %p49 = scmp.ne.s32.totalorder %s38, %s41
      %p50 = scmp.eq.s32.totalorder %s19, 1
      %p51 = por %p49, %p50
      %p52 = scmp.ne.s32.totalorder %s41, %s42
      %p53 = scmp.eq.s32.totalorder %s19, 0
      %p54 = por %p52, %p53
      %p55 = scmp.ne.s32.totalorder %s41, %s42
      %p56 = scmp.eq.s32.totalorder %s20, 1
      %p57 = por %p55, %p56
      %p59 = scmp.ne.s32.totalorder %s42, %s58
      %p60 = scmp.eq.s32.totalorder %s20, 0
      %p61 = por %p59, %p60
      %s62 = ssub.s32 %s21, %s33
      %p63 = scmp.eq.s32.totalorder %s62, 0
      %s65 = sadd.s32 %s64, 1
      %s66 = scalar_select %p63, %s64, %s65
      %p69 = pneg %p63
      %p70 = scmp.eq.s32.totalorder %s14, 1
      %p71 = por %p69, %p70
      %p72 = scmp.ne.s32.totalorder %s64, %s67
      %p73 = scmp.eq.s32.totalorder %s14, 0
      %p74 = por %p72, %p73
      %p75 = scmp.ne.s32.totalorder %s64, %s67
      %p76 = scmp.eq.s32.totalorder %s19, 1
      %p77 = por %p75, %p76
      %p78 = scmp.ne.s32.totalorder %s67, %s68
      %p79 = scmp.eq.s32.totalorder %s19, 0
      %p80 = por %p78, %p79
      %p81 = scmp.ne.s32.totalorder %s67, %s68
      %p82 = scmp.eq.s32.totalorder %s20, 1
      %p83 = por %p81, %p82
      %p85 = scmp.ne.s32.totalorder %s68, %s84
      %p86 = scmp.eq.s32.totalorder %s20, 0
      %p87 = por %p85, %p86
      %s88 = ssub.s32 %s21, %s33
      %p89 = scmp.eq.s32.totalorder %s88, 0
      %s91 = sadd.s32 %s90, 1
      %s92 = scalar_select %p89, %s90, %s91
      %p95 = pneg %p89
      %p96 = scmp.eq.s32.totalorder %s14, 1
      %p97 = por %p95, %p96
      %p98 = scmp.ne.s32.totalorder %s90, %s93
      %p99 = scmp.eq.s32.totalorder %s14, 0
      %p100 = por %p98, %p99
      %p101 = scmp.ne.s32.totalorder %s90, %s93
      %p102 = scmp.eq.s32.totalorder %s19, 1
      %p103 = por %p101, %p102
      %p104 = scmp.ne.s32.totalorder %s93, %s94
      %p105 = scmp.eq.s32.totalorder %s19, 0
      %p106 = por %p104, %p105
      %p107 = scmp.ne.s32.totalorder %s93, %s94
      %p108 = scmp.eq.s32.totalorder %s20, 1
      %p109 = por %p107, %p108
      %p111 = scmp.ne.s32.totalorder %s94, %s110
      %p112 = scmp.eq.s32.totalorder %s20, 0
      %p113 = por %p111, %p112
      %s114 = ssub.s32 %s21, %s33
      %p115 = scmp.eq.s32.totalorder %s114, 0
      %s117 = sadd.s32 %s116, 1
      %s118 = scalar_select %p115, %s116, %s117
      %p121 = pneg %p115
      %p122 = scmp.eq.s32.totalorder %s14, 1
      %p123 = por %p121, %p122
      %p124 = scmp.ne.s32.totalorder %s116, %s119
      %p125 = scmp.eq.s32.totalorder %s14, 0
      %p126 = por %p124, %p125
      %p127 = scmp.ne.s32.totalorder %s116, %s119
      %p128 = scmp.eq.s32.totalorder %s19, 1
      %p129 = por %p127, %p128
      %p130 = scmp.ne.s32.totalorder %s119, %s120
      %p131 = scmp.eq.s32.totalorder %s19, 0
      %p132 = por %p130, %p131
      %p133 = scmp.ne.s32.totalorder %s119, %s120
      %p134 = scmp.eq.s32.totalorder %s20, 1
      %p135 = por %p133, %p134
      %p137 = scmp.ne.s32.totalorder %s120, %s136
      %p138 = scmp.eq.s32.totalorder %s20, 0
      %p139 = por %p137, %p138
      %s140 = ssub.s32 %s21, %s33
      %p141 = scmp.eq.s32.totalorder %s140, 0
      %s143 = sadd.s32 %s142, 1
      %s144 = scalar_select %p141, %s142, %s143
      %p147 = pneg %p141
      %p148 = scmp.eq.s32.totalorder %s14, 1
      %p149 = por %p147, %p148
      %p150 = scmp.ne.s32.totalorder %s142, %s145
      %p151 = scmp.eq.s32.totalorder %s14, 0
      %p152 = por %p150, %p151
      %p153 = scmp.ne.s32.totalorder %s142, %s145
      %p154 = scmp.eq.s32.totalorder %s19, 1
      %p155 = por %p153, %p154
      %p156 = scmp.ne.s32.totalorder %s145, %s146
      %p157 = scmp.eq.s32.totalorder %s19, 0
      %p158 = por %p156, %p157
      %p159 = scmp.ne.s32.totalorder %s145, %s146
      %p160 = scmp.eq.s32.totalorder %s20, 1
      %p161 = por %p159, %p160
      %p163 = scmp.ne.s32.totalorder %s146, %s162
      %p164 = scmp.eq.s32.totalorder %s20, 0
      %p165 = por %p163, %p164
      %s166 = ssub.s32 %s22, %s29
      %s167 = ssub.s32 %s21, %s33
      %s168 = sor.u32 %s166, %s167
      %p169 = scmp.eq.s32.totalorder %s168, 0
      %s171 = sadd.s32 %s170, 1
      %s172 = scalar_select %p169, %s170, %s171
      %p175 = pneg %p169
      %p176 = scmp.eq.s32.totalorder %s14, 1
      %p177 = por %p175, %p176
      %p178 = scmp.ne.s32.totalorder %s170, %s173
      %p179 = scmp.eq.s32.totalorder %s14, 0
      %p180 = por %p178, %p179
      %p181 = scmp.ne.s32.totalorder %s170, %s173
      %p182 = scmp.eq.s32.totalorder %s19, 1
      %p183 = por %p181, %p182
      %p184 = scmp.ne.s32.totalorder %s173, %s174
      %p185 = scmp.eq.s32.totalorder %s19, 0
      %p186 = por %p184, %p185
      %p187 = scmp.ne.s32.totalorder %s173, %s174
      %p188 = scmp.eq.s32.totalorder %s20, 1
      %p189 = por %p187, %p188
      %p191 = scmp.ne.s32.totalorder %s174, %s190
      %p192 = scmp.eq.s32.totalorder %s20, 0
      %p193 = por %p191, %p192
      %p194 = scmp.le.s32.totalorder 1, %s14
      %p195 = scmp.lt.s32.totalorder %s14, 3
      %p196 = pnand %p194, %p195
      %p197 = pneg %p196
      // Predicated region
      $region9: #{bandsplit_forward.2} parent=5 // pred_check
        _
      $region10: #{bandsplit_forward.2} parent=5 // pred_check_branch
        %199 = sbr.rel (%p196) target = $region12
      $region11: #{bandsplit_forward.2} parent=5 // pred_region
        %s200 = ssub.s32 %s14, 1
        // Predicated region
        $region13: #{bandsplit_forward.2} parent=11 // pred_check
          %p201 = pneg %p80
        $region14: #{bandsplit_forward.2} parent=11 // pred_check_branch
          %203 = sbr.rel (%p201) target = $region16
        $region15: #{bandsplit_forward.2} parent=11 // pred_region
          %p204 = scmp.lt.s32.totalorder %s23, 0
          %s205 = scalar_select %p204, %s23, 0
          %s206 = smul.addr %s205, 2
          %s207 = smul.addr %s206, 8
          %s208 = scalar_lea.vmem %s1, %s207
        $region16: #{bandsplit_forward.2} parent=11 // pred_fallthru
          _
        // Predicated region
        $region17: #{bandsplit_forward.2} parent=11 // pred_check
          %p209 = pneg %p106
        $region18: #{bandsplit_forward.2} parent=11 // pred_check_branch
          %211 = sbr.rel (%p209) target = $region20
        $region19: #{bandsplit_forward.2} parent=11 // pred_region
          %p212 = scmp.lt.s32.totalorder %s23, 0
          %s213 = scalar_select %p212, %s23, 0
          %s214 = smul.addr %s213, 2
          %s215 = smul.addr %s214, 8
          %s216 = scalar_lea.vmem %s2, %s215
        $region20: #{bandsplit_forward.2} parent=11 // pred_fallthru
          _
        // Predicated region
        $region21: #{bandsplit_forward.2} parent=11 // pred_check
          %p217 = pneg %p132
        $region22: #{bandsplit_forward.2} parent=11 // pred_check_branch
          %219 = sbr.rel (%p217) target = $region24
        $region23: #{bandsplit_forward.2} parent=11 // pred_region
          %p220 = scmp.lt.s32.totalorder %s23, 0
          %s221 = scalar_select %p220, %s23, 0
          %s222 = smul.addr %s221, 16
          %s223 = smul.addr %s222, 8
          %s224 = scalar_lea.vmem %s3, %s223
        $region24: #{bandsplit_forward.2} parent=11 // pred_fallthru
          _
        // Predicated region
        $region25: #{bandsplit_forward.2} parent=11 // pred_check
          %p225 = pneg %p158
        $region26: #{bandsplit_forward.2} parent=11 // pred_check_branch
          %227 = sbr.rel (%p225) target = $region28
        $region27: #{bandsplit_forward.2} parent=11 // pred_region
          %p228 = scmp.lt.s32.totalorder %s23, 0
          %s229 = scalar_select %p228, %s23, 0
          %s230 = scalar_lea.vmem %s4, %s229
        $region28: #{bandsplit_forward.2} parent=11 // pred_fallthru
          _
      $region12: #{bandsplit_forward.2} parent=5 // pred_fallthru
        _
      %p231 = scmp.lt.s32.totalorder %s14, 2
      // Predicated region
      $region29: #{bandsplit_forward.2} parent=5 // pred_check
        %p232 = pneg %p231
      $region30: #{bandsplit_forward.2} parent=5 // pred_check_branch
        %234 = sbr.rel (%p232) target = $region32
      $region31: #{bandsplit_forward.2} parent=5 // pred_region
        // Predicated region
        $region33: #{bandsplit_forward.2} parent=31 // pred_check
          %p235 = pneg %p48
        $region34: #{bandsplit_forward.2} parent=31 // pred_check_branch
          %237 = sbr.rel (%p235) target = $region36
        $region35: #{bandsplit_forward.2} parent=31 // pred_region
          %p238 = scmp.lt.s32.totalorder %s22, 1
          %s239 = scalar_select %p238, %s22, 1
          %p240 = scmp.lt.s32.totalorder %s21, 0
          %s241 = scalar_select %p240, %s21, 0
          %s242 = smul.addr %s241, 2
          %s243 = smul.addr %s239, 2
          %s244 = sadd.s32 %s242, %s243
          %s245 = smul.addr %s244, 8
          %s246 = scalar_lea.vmem %s0, %s245
        $region36: #{bandsplit_forward.2} parent=31 // pred_fallthru
          _
      $region32: #{bandsplit_forward.2} parent=5 // pred_fallthru
        _
      %p247 = scmp.le.s32.totalorder 1, %s14
      %p248 = scmp.lt.s32.totalorder %s14, 3
      %p249 = pnand %p247, %p248
      %p250 = pneg %p249
      // Predicated region
      $region37: #{bandsplit_forward.2} parent=5 // pred_check
        _
      $region38: #{bandsplit_forward.2} parent=5 // pred_check_branch
        %252 = sbr.rel (%p249) target = $region40
      $region39: #{bandsplit_forward.2} parent=5 // pred_region
        %s253 = ssub.s32 %s14, 1
        %p254 = scmp.lt.s32.totalorder %s24, 1
        %s255 = scalar_select %p254, %s24, 1
        %p256 = scmp.lt.s32.totalorder %s23, 0
        %s257 = scalar_select %p256, %s23, 0
        %s258 = smul.addr %s257, 2
        %s259 = smul.addr %s255, 2
        %s260 = sadd.s32 %s258, %s259
        %s261 = smul.addr %s260, 8
        %s262 = scalar_lea.vmem %s0, %s261
        %p263 = pneg %p54
        %p264 = pneg %p51
        %p265 = scmp.lt.s32.totalorder %s23, 0
        %s266 = scalar_select %p265, %s23, 0
        %s267 = smul.addr %s266, 2
        %s268 = smul.addr %s267, 8
        %s269 = scalar_lea.vmem %s1, %s268
        %p270 = pneg %p80
        %p271 = pneg %p77
        %p272 = scmp.lt.s32.totalorder %s23, 0
        %s273 = scalar_select %p272, %s23, 0
        %s274 = smul.addr %s273, 2
        %s275 = smul.addr %s274, 8
        %s276 = scalar_lea.vmem %s2, %s275
        %p277 = pneg %p106
        %p278 = pneg %p103
        %p279 = scmp.lt.s32.totalorder %s23, 0
        %s280 = scalar_select %p279, %s23, 0
        %s281 = smul.addr %s280, 16
        %s282 = smul.addr %s281, 8
        %s283 = scalar_lea.vmem %s3, %s282
        %p284 = pneg %p132
        %p285 = pneg %p129
        %p286 = scmp.lt.s32.totalorder %s23, 0
        %s287 = scalar_select %p286, %s23, 0
        %s288 = scalar_lea.vmem %s4, %s287
        %p289 = pneg %p158
        %p290 = pneg %p155
        %p291 = pneg %p186
        %p292 = pneg %p183
        %s293 = sand.u32 %s173, 1
        %s294 = scalar_lea.sflag [#allocation3], %s293
        %s295 = sand.u32 %s173, 1
        %s296 = smul.addr %s295, 128
        %s297 = scalar_lea.vmem [#allocation2], %s296
        %p298 = scmp.lt.s32.totalorder %s24, 1
        %s299 = scalar_select %p298, %s24, 1
        %p300 = scmp.lt.s32.totalorder %s23, 0
        %s301 = scalar_select %p300, %s23, 0
        %s302 = smul.addr %s301, 2
        %s303 = smul.addr %s299, 2
        %s304 = sadd.s32 %s302, %s303
        %s305 = smul.addr %s304, 8
        %s306 = scalar_lea.vmem %s0, %s305
        %p307 = scmp.lt.s32.totalorder %s23, 0
        %s308 = scalar_select %p307, %s23, 0
        %s309 = smul.addr %s308, 2
        %s310 = smul.addr %s309, 8
        %s311 = scalar_lea.vmem %s1, %s310
        %p312 = scmp.lt.s32.totalorder %s23, 0
        %s313 = scalar_select %p312, %s23, 0
        %s314 = smul.addr %s313, 2
        %s315 = smul.addr %s314, 8
        %s316 = scalar_lea.vmem %s2, %s315
        %p317 = scmp.lt.s32.totalorder %s23, 0
        %s318 = scalar_select %p317, %s23, 0
        %s319 = smul.addr %s318, 16
        %s320 = smul.addr %s319, 8
        %s321 = scalar_lea.vmem %s3, %s320
        %p322 = scmp.lt.s32.totalorder %s23, 0
        %s323 = scalar_select %p322, %s23, 0
        %s324 = scalar_lea.vmem %s4, %s323
        %v325 = vld [vmem:[%s306] sm:$0xff]
        %v326 = vld [vmem:[%s306 + $0x8] sm:$0xff]
        %v327 = vadd.f32 %v325, %v326
        %328 = vadd.xlane.f32.xlu0 %v327
        %v329 = vpop.xlane.xlu0 %328
        %v330 = vrot.slane %v329, 4
        %v331 = vadd.f32 %v329, %v330
        %v332 = vrot.slane %v331, 2
        %v333 = vadd.f32 %v331, %v332
        %v334 = vrot.slane %v333, 1
        %v335 = vadd.f32 %v333, %v334
        %s336 = vtos %v335
        %v337 = vmul.f32 %v325, %v325
        %v338 = vmul.f32 %v326, %v326
        %v339 = vadd.f32 %v337, %v338
        %340 = vadd.xlane.f32.xlu0 %v339
        %v341 = vpop.xlane.xlu0 %340
        %v342 = vrot.slane %v341, 4
        %v343 = vadd.f32 %v341, %v342
        %v344 = vrot.slane %v343, 2
        %v345 = vadd.f32 %v343, %v344
        %v346 = vrot.slane %v345, 1
        %v347 = vadd.f32 %v345, %v346
        %s348 = vtos %v347
        %s349 = smul.f32 %s336, 0.00048828125
        %s350 = smul.f32 %s348, 0.00048828125
        %s351 = smul.f32 %s349, %s349
        %s352 = ssub.f32 %s350, %s351
        %s353 = sadd.f32 %s352, 1e-05
        %v354 = vstv %s353
        %v355 = vrsqrt.pop %v354
        %v356 = vmul.f32 %v355, %v354
        %v357 = vmul.f32 %v356, %v355
        %v358 = vmul.f32 0.5, %v357
        %v359 = vsub.f32 1.5, %v358
        %v360 = vmul.f32 %v355, %v359
        %vm361 = vweird.f32 %v354
        %vm362 = vweird.f32 %v355
        %vm363 = vmor %vm361, %vm362
        %v364 = vsel %vm363, %v355, %v360
        %s365 = vtos %v364
        %v366 = vstv %s349
        %v367 = vsub.f32 %v325, %v366
        %v368 = vsub.f32 %v326, %v366
        %v369 = vstv %s365
        %v370 = vmul.f32 %v367, %v369
        %v371 = vmul.f32 %v368, %v369
        %v372 = vld [vmem:[%s311] sm:$0xff]
        %v373 = vld [vmem:[%s311 + $0x8] sm:$0xff]
        %v374 = vmul.f32 %v370, %v372
        %v375 = vmul.f32 %v371, %v373
        %v376 = vld [vmem:[%s316] sm:$0xff]
        %v377 = vld [vmem:[%s316 + $0x8] sm:$0xff]
        %v378 = vadd.f32 %v374, %v376
        %v379 = vadd.f32 %v375, %v377
        %v380 = vld [vmem:[%s321] sm:$0xff]
        %v381 = vld [vmem:[%s321 + $0x8] sm:$0xff]
        %v382 = vld [vmem:[%s321 + $0x10] sm:$0xff]
        %v383 = vld [vmem:[%s321 + $0x18] sm:$0xff]
        %v384 = vld [vmem:[%s321 + $0x20] sm:$0xff]
        %v385 = vld [vmem:[%s321 + $0x28] sm:$0xff]
        %v386 = vld [vmem:[%s321 + $0x30] sm:$0xff]
        %v387 = vld [vmem:[%s321 + $0x38] sm:$0xff]
        %v388 = vld [vmem:[%s321 + $0x40] sm:$0xff]
        %v389 = vld [vmem:[%s321 + $0x48] sm:$0xff]
        %v390 = vld [vmem:[%s321 + $0x50] sm:$0xff]
        %v391 = vld [vmem:[%s321 + $0x58] sm:$0xff]
        %v392 = vld [vmem:[%s321 + $0x60] sm:$0xff]
        %v393 = vld [vmem:[%s321 + $0x68] sm:$0xff]
        %v394 = vld [vmem:[%s321 + $0x70] sm:$0xff]
        %v395 = vld [vmem:[%s321 + $0x78] sm:$0xff]
        %v396 = vld [vmem:[%s324] sm:$0x1]
        %v398 = vperm.slane %v396, 0
        %400 = vxpose.xlu0.b32.start [1/16] %v378, 128
        %401 = vxpose.xlu0.b32.cont [2/16] %v379, 128
        %402 = vxpose.xlu0.b32.cont [3/16] 0.0, 128
        %403 = vxpose.xlu0.b32.cont [4/16] 0.0, 128
        %404 = vxpose.xlu0.b32.cont [5/16] 0.0, 128
        %405 = vxpose.xlu0.b32.cont [6/16] 0.0, 128
        %406 = vxpose.xlu0.b32.cont [7/16] 0.0, 128
        %407 = vxpose.xlu0.b32.cont [8/16] 0.0, 128
        %408 = vxpose.xlu0.b32.cont [9/16] 0.0, 128
        %409 = vxpose.xlu0.b32.cont [10/16] 0.0, 128
        %410 = vxpose.xlu0.b32.cont [11/16] 0.0, 128
        %411 = vxpose.xlu0.b32.cont [12/16] 0.0, 128
        %412 = vxpose.xlu0.b32.cont [13/16] 0.0, 128
        %413 = vxpose.xlu0.b32.cont [14/16] 0.0, 128
        %414 = vxpose.xlu0.b32.cont [15/16] 0.0, 128
        %415 = vxpose.xlu0.b32.end [16/16] 0.0, 128
        %v416 = vpop.trf.xlu0
        %v417 = vpop.trf.xlu0
        %v418 = vpop.trf.xlu0
        %v419 = vpop.trf.xlu0
        %v420 = vpop.trf.xlu0
        %v421 = vpop.trf.xlu0
        %v422 = vpop.trf.xlu0
        %v423 = vpop.trf.xlu0
        %v424 = vpop.trf.xlu0
        %v425 = vpop.trf.xlu0
        %v426 = vpop.trf.xlu0
        %v427 = vpop.trf.xlu0
        %v428 = vpop.trf.xlu0
        %v429 = vpop.trf.xlu0
        %v430 = vpop.trf.xlu0
        %v431 = vpop.trf.xlu0
        %vm432 = vcmask 130048
        %v434 = vsel %vm432, %v416, 0
        %v437 = vsel %vm432, %v417, 0
        %v440 = vsel %vm432, %v418, 0
        %v443 = vsel %vm432, %v419, 0
        %v446 = vsel %vm432, %v420, 0
        %v449 = vsel %vm432, %v421, 0
        %v452 = vsel %vm432, %v422, 0
        %v455 = vsel %vm432, %v423, 0
        %v458 = vsel %vm432, %v424, 0
        %v461 = vsel %vm432, %v425, 0
        %v464 = vsel %vm432, %v426, 0
        %v467 = vsel %vm432, %v427, 0
        %v470 = vsel %vm432, %v428, 0
        %v473 = vsel %vm432, %v429, 0
        %v476 = vsel %vm432, %v430, 0
        %v479 = vsel %vm432, %v431, 0
        %v482 = vsel %vm432, %v380, 0
        %v485 = vsel %vm432, %v381, 0
        %v488 = vsel %vm432, %v382, 0
        %v491 = vsel %vm432, %v383, 0
        %v494 = vsel %vm432, %v384, 0
        %v497 = vsel %vm432, %v385, 0
        %v500 = vsel %vm432, %v386, 0
        %v503 = vsel %vm432, %v387, 0
        %v506 = vsel %vm432, %v388, 0
        %v509 = vsel %vm432, %v389, 0
        %v512 = vsel %vm432, %v390, 0
        %v515 = vsel %vm432, %v391, 0
        %v518 = vsel %vm432, %v392, 0
        %v521 = vsel %vm432, %v393, 0
        %v524 = vsel %vm432, %v394, 0
        %v527 = vsel %vm432, %v395, 0
        %529 = vmatpush.xpose.msra.mxu0 %v527
        %530 = vmatpush.xpose.msra.mxu0 %v524
        %531 = vmatpush.xpose.msra.mxu0 %v521
        %532 = vmatpush.xpose.msra.mxu0 %v518
        %533 = vmatpush.xpose.msra.mxu0 %v515
        %534 = vmatpush.xpose.msra.mxu0 %v512
        %535 = vmatpush.xpose.msra.mxu0 %v509
        %536 = vmatpush.xpose.msra.mxu0 %v506
        %537 = vmatpush.xpose.msra.mxu0 %v503
        %538 = vmatpush.xpose.msra.mxu0 %v500
        %539 = vmatpush.xpose.msra.mxu0 %v497
        %540 = vmatpush.xpose.msra.mxu0 %v494
        %541 = vmatpush.xpose.msra.mxu0 %v491
        %542 = vmatpush.xpose.msra.mxu0 %v488
        %543 = vmatpush.xpose.msra.mxu0 %v485
        %544 = vmatpush.xpose.msra.mxu0 %v482
        %545 = vmatmul.f32.gmra.mxu0 %v434
        %v546 = vpop.f32.mrf.mxu0
        %v547 = vadd.f32 %v398, %v546
        %548 = vmatmul.f32.gmra.mxu0 %v437
        %v549 = vpop.f32.mrf.mxu0
        %v550 = vadd.f32 %v398, %v549
        %551 = vmatmul.f32.gmra.mxu0 %v440
        %v552 = vpop.f32.mrf.mxu0
        %v553 = vadd.f32 %v398, %v552
        %554 = vmatmul.f32.gmra.mxu0 %v443
        %v555 = vpop.f32.mrf.mxu0
        %v556 = vadd.f32 %v398, %v555
        %557 = vmatmul.f32.gmra.mxu0 %v446
        %v558 = vpop.f32.mrf.mxu0
        %v559 = vadd.f32 %v398, %v558
        %560 = vmatmul.f32.gmra.mxu0 %v449
        %v561 = vpop.f32.mrf.mxu0
        %v562 = vadd.f32 %v398, %v561
        %563 = vmatmul.f32.gmra.mxu0 %v452
        %v564 = vpop.f32.mrf.mxu0
        %v565 = vadd.f32 %v398, %v564
        %566 = vmatmul.f32.gmra.mxu0 %v455
        %v567 = vpop.f32.mrf.mxu0
        %v568 = vadd.f32 %v398, %v567
        %569 = vmatmul.f32.gmra.mxu0 %v458
        %v570 = vpop.f32.mrf.mxu0
        %v571 = vadd.f32 %v398, %v570
        %572 = vmatmul.f32.gmra.mxu0 %v461
        %v573 = vpop.f32.mrf.mxu0
        %v574 = vadd.f32 %v398, %v573
        %575 = vmatmul.f32.gmra.mxu0 %v464
        %v576 = vpop.f32.mrf.mxu0
        %v577 = vadd.f32 %v398, %v576
        %578 = vmatmul.f32.gmra.mxu0 %v467
        %v579 = vpop.f32.mrf.mxu0
        %v580 = vadd.f32 %v398, %v579
        %581 = vmatmul.f32.gmra.mxu0 %v470
        %v582 = vpop.f32.mrf.mxu0
        %v583 = vadd.f32 %v398, %v582
        %584 = vmatmul.f32.gmra.mxu0 %v473
        %v585 = vpop.f32.mrf.mxu0
        %v586 = vadd.f32 %v398, %v585
        %587 = vmatmul.f32.gmra.mxu0 %v476
        %v588 = vpop.f32.mrf.mxu0
        %v589 = vadd.f32 %v398, %v588
        %590 = vmatmul.f32.gmra.mxu0 %v479
        %v591 = vpop.f32.mrf.mxu0
        %v592 = vadd.f32 %v398, %v591
        %593 = vdwg.mxu0
        %594 = vst [vmem:[%s297] sm:$0xff] %v547
        %595 = vst [vmem:[%s297 + $0x8] sm:$0xff] %v550
        %596 = vst [vmem:[%s297 + $0x10] sm:$0xff] %v553
        %597 = vst [vmem:[%s297 + $0x18] sm:$0xff] %v556
        %598 = vst [vmem:[%s297 + $0x20] sm:$0xff] %v559
        %599 = vst [vmem:[%s297 + $0x28] sm:$0xff] %v562
        %600 = vst [vmem:[%s297 + $0x30] sm:$0xff] %v565
        %601 = vst [vmem:[%s297 + $0x38] sm:$0xff] %v568
        %602 = vst [vmem:[%s297 + $0x40] sm:$0xff] %v571
        %603 = vst [vmem:[%s297 + $0x48] sm:$0xff] %v574
        %604 = vst [vmem:[%s297 + $0x50] sm:$0xff] %v577
        %605 = vst [vmem:[%s297 + $0x58] sm:$0xff] %v580
        %606 = vst [vmem:[%s297 + $0x60] sm:$0xff] %v583
        %607 = vst [vmem:[%s297 + $0x68] sm:$0xff] %v586
        %608 = vst [vmem:[%s297 + $0x70] sm:$0xff] %v589
        %609 = vst [vmem:[%s297 + $0x78] sm:$0xff] %v592
        %s610 = sand.u32 %s173, 1
        %s611 = scalar_lea.sflag [#allocation3], %s610
        %s612 = sand.u32 %s173, 1
        %s613 = smul.addr %s612, 128
        %s614 = scalar_lea.vmem [#allocation2], %s613
        // Predicated region
        $region41: #{bandsplit_forward.2} parent=39 // pred_check
          %p615 = pneg %p183
        $region42: #{bandsplit_forward.2} parent=39 // pred_check_branch
          %617 = sbr.rel (%p615) target = $region44
        $region43: #{bandsplit_forward.2} parent=39 // pred_region
          %619 = vsyncadd %s611, 0
          %s620 = smul.addr %s23, 16
          %s621 = smul.addr %s24, 48
          %s622 = sadd.s32 %s620, %s621
          %s623 = smul.addr %s622, 8
          %s624 = scalar_lea.hbm %s5, %s623
          %s625 = sshll.u32 %s614, 4
          %s626 = int_to_ptr.vmem [resolvable:$true] %s625
          %s627 = sshll.u32 %s624, 4
          %s628 = int_to_ptr.hbm [resolvable:$true] %s627
          %633 = dma.vmem_to_hbm [thread:$0]  %s626, 2048, %s628, %s611, 128, 128, 8
        $region44: #{bandsplit_forward.2} parent=39 // pred_fallthru
          _
      $region40: #{bandsplit_forward.2} parent=5 // pred_fallthru
        _
      %p634 = scmp.le.s32.totalorder 2, %s14
      // Predicated region
      $region45: #{bandsplit_forward.2} parent=5 // pred_check
        %p635 = pneg %p634
      $region46: #{bandsplit_forward.2} parent=5 // pred_check_branch
        %637 = sbr.rel (%p635) target = $region48
      $region47: #{bandsplit_forward.2} parent=5 // pred_region
        %s638 = ssub.s32 %s14, 2
        // Predicated region
        $region49: #{bandsplit_forward.2} parent=47 // pred_check
          %p639 = pneg %p189
        $region50: #{bandsplit_forward.2} parent=47 // pred_check_branch
          %641 = sbr.rel (%p639) target = $region52
        $region51: #{bandsplit_forward.2} parent=47 // pred_region
          %s642 = sand.u32 %s174, 1
          %s643 = scalar_lea.sflag [#allocation3], %s642
          %s644 = sand.u32 %s174, 1
          %s645 = smul.addr %s644, 128
          %s646 = scalar_lea.vmem [#allocation2], %s645
          %648 = dma.done %s643, 2048
        $region52: #{bandsplit_forward.2} parent=47 // pred_fallthru
          _
      $region48: #{bandsplit_forward.2} parent=5 // pred_fallthru
        _
    $region6: #{bandsplit_forward.2} parent=1 // loop_footer
      %s18 = sadd.s32 1, %s14
    $region7: #{bandsplit_forward.2} parent=1 // loop_footer_branch
      %13 = sbr.rel target = $region3
    $region8: #{bandsplit_forward.2} parent=1 // loop_exit
      _
    %649 = vsyncpa [#allocation3], 1
    %s650 = scalar_lea.sflag [#allocation3], 1
    %651 = vsyncpa %s650, 1

// kernel: bandsplit_forward.3
$region0: #{bandsplit_forward.3}
  #allocation0 [shape = 'u32[]', space=smem, size = 0x4, offset = 0x4, fixed_abs, tag = 'smem constant byte address 0x4 - core index']
  #allocation1 [shape = 'u32[72,128]{1,0:T(1,128)}', space=vmem, size = 0x9000, scoped, tag = 'internal scratch']
  %s0 = inlined_call_operand.vmem [shape: f32[2,2,24,128], index: 0, kind: input, shape index: {}]
  %s1 = inlined_call_operand.vmem [shape: f32[2,24,128], index: 1, kind: input, shape index: {}]
  %s2 = inlined_call_operand.vmem [shape: f32[2,24,128], index: 2, kind: input, shape index: {}]
  %s3 = inlined_call_operand.vmem [shape: f32[2,128,24], index: 3, kind: input, shape index: {}]
  %s4 = inlined_call_operand.vmem [shape: f32[2,1,128], index: 4, kind: input, shape index: {}]
  %s5 = inlined_call_operand.hbm [shape: f32[2,3,128,128], index: 5, kind: input, shape index: {}, may-alias: {5,6}]
  %s6 = inlined_call_operand.hbm [shape: f32[2,3,128,128], index: 6, kind: output, shape index: {}, may-alias: {5,6}]
  %s7 = sld [smem:[#allocation0]]
  $region53: #{bandsplit_forward.3} parent=0
    _
  %s9 = ssub.s32 1, %s7
  %s10 = scalar_select 0, %s9, %s7
  $region1: #{bandsplit_forward.3} parent=0
    #allocation2 [shape = 'u8[131072]{0}', space=vmem, size = 0x20000, scoped, tag = 'output window, operand 0']
    #allocation3 [shape = 's32[2]{0}', space=sflag, size = 0x8, scoped, tag = 'scoped memory for bandsplit_forward.3']
    %11 = vsyncpa [#allocation3], 0
    %s12 = scalar_lea.sflag [#allocation3], 1
    %13 = vsyncpa %s12, 0
    loop: start=0, step=1, limit=6
    $region2: #{bandsplit_forward.3} parent=1 // loop_pre_header
      _
    $region3: #{bandsplit_forward.3} parent=1 // loop_header
      %s15 = sphi 0, %s19
      %p16 = scmp.ge.s32.totalorder %s15, 6
      %s22 = sphi 0, %s34
      %s23 = sphi 0, %s30
      %s24 = sphi 0, %s22
      %s25 = sphi 0, %s23
      %s26 = sphi 0, %s24
      %s27 = sphi 0, %s25
      %s39 = sphi 0, %s41
      %s42 = sphi 0, %s39
      %s43 = sphi 0, %s42
      %s59 = sphi 0, %s43
      %s65 = sphi 0, %s67
      %s68 = sphi 0, %s65
      %s69 = sphi 0, %s68
      %s85 = sphi 0, %s69
      %s91 = sphi 0, %s93
      %s94 = sphi 0, %s91
      %s95 = sphi 0, %s94
      %s111 = sphi 0, %s95
      %s117 = sphi 0, %s119
      %s120 = sphi 0, %s117
      %s121 = sphi 0, %s120
      %s137 = sphi 0, %s121
      %s143 = sphi 0, %s145
      %s146 = sphi 0, %s143
      %s147 = sphi 0, %s146
      %s163 = sphi 0, %s147
      %s173 = sphi 0, %s175
      %s176 = sphi 0, %s173
      %s177 = sphi 0, %s176
      %s193 = sphi 0, %s177
    $region4: #{bandsplit_forward.3} parent=1 // loop_header_branch
      %18 = sbr.rel (%p16) target = $region8
    $region5: #{bandsplit_forward.3} parent=1 // loop_body
      %s20 = ssub.s32 %s15, 1
      %s21 = ssub.s32 %s15, 2
      %s28 = sadd.s32 1, %s23
      %p29 = scmp.ge.s32.totalorder %s28, 2
      %s30 = scalar_select %p29, 0, %s28
      %s31 = sadd.s32 1, %s22
      %s32 = scalar_select %p29, %s31, %s22
      %p33 = scmp.ge.s32.totalorder %s32, 2
      %s34 = scalar_select %p33, 0, %s32
      %s35 = ssub.s32 %s23, %s30
      %s36 = ssub.s32 %s22, %s34
      %s37 = sor.u32 %s35, %s36
      %p38 = scmp.eq.s32.totalorder %s37, 0
      %s40 = sadd.s32 %s39, 1
      %s41 = scalar_select %p38, %s39, %s40
      %p44 = pneg %p38
      %p45 = scmp.eq.s32.totalorder %s15, 3
      %p46 = por %p44, %p45
      %p47 = scmp.ne.s32.totalorder %s39, %s42
      %p48 = scmp.eq.s32.totalorder %s15, 0
      %p49 = por %p47, %p48
      %p50 = scmp.ne.s32.totalorder %s39, %s42
      %p51 = scmp.eq.s32.totalorder %s20, 3
      %p52 = por %p50, %p51
      %p53 = scmp.ne.s32.totalorder %s42, %s43
      %p54 = scmp.eq.s32.totalorder %s20, 0
      %p55 = por %p53, %p54
      %p56 = scmp.ne.s32.totalorder %s42, %s43
      %p57 = scmp.eq.s32.totalorder %s21, 3
      %p58 = por %p56, %p57
      %p60 = scmp.ne.s32.totalorder %s43, %s59
      %p61 = scmp.eq.s32.totalorder %s21, 0
      %p62 = por %p60, %p61
      %s63 = ssub.s32 %s22, %s34
      %p64 = scmp.eq.s32.totalorder %s63, 0
      %s66 = sadd.s32 %s65, 1
      %s67 = scalar_select %p64, %s65, %s66
      %p70 = pneg %p64
      %p71 = scmp.eq.s32.totalorder %s15, 3
      %p72 = por %p70, %p71
      %p73 = scmp.ne.s32.totalorder %s65, %s68
      %p74 = scmp.eq.s32.totalorder %s15, 0
      %p75 = por %p73, %p74
      %p76 = scmp.ne.s32.totalorder %s65, %s68
      %p77 = scmp.eq.s32.totalorder %s20, 3
      %p78 = por %p76, %p77
      %p79 = scmp.ne.s32.totalorder %s68, %s69
      %p80 = scmp.eq.s32.totalorder %s20, 0
      %p81 = por %p79, %p80
      %p82 = scmp.ne.s32.totalorder %s68, %s69
      %p83 = scmp.eq.s32.totalorder %s21, 3
      %p84 = por %p82, %p83
      %p86 = scmp.ne.s32.totalorder %s69, %s85
      %p87 = scmp.eq.s32.totalorder %s21, 0
      %p88 = por %p86, %p87
      %s89 = ssub.s32 %s22, %s34
      %p90 = scmp.eq.s32.totalorder %s89, 0
      %s92 = sadd.s32 %s91, 1
      %s93 = scalar_select %p90, %s91, %s92
      %p96 = pneg %p90
      %p97 = scmp.eq.s32.totalorder %s15, 3
      %p98 = por %p96, %p97
      %p99 = scmp.ne.s32.totalorder %s91, %s94
      %p100 = scmp.eq.s32.totalorder %s15, 0
      %p101 = por %p99, %p100
      %p102 = scmp.ne.s32.totalorder %s91, %s94
      %p103 = scmp.eq.s32.totalorder %s20, 3
      %p104 = por %p102, %p103
      %p105 = scmp.ne.s32.totalorder %s94, %s95
      %p106 = scmp.eq.s32.totalorder %s20, 0
      %p107 = por %p105, %p106
      %p108 = scmp.ne.s32.totalorder %s94, %s95
      %p109 = scmp.eq.s32.totalorder %s21, 3
      %p110 = por %p108, %p109
      %p112 = scmp.ne.s32.totalorder %s95, %s111
      %p113 = scmp.eq.s32.totalorder %s21, 0
      %p114 = por %p112, %p113
      %s115 = ssub.s32 %s22, %s34
      %p116 = scmp.eq.s32.totalorder %s115, 0
      %s118 = sadd.s32 %s117, 1
      %s119 = scalar_select %p116, %s117, %s118
      %p122 = pneg %p116
      %p123 = scmp.eq.s32.totalorder %s15, 3
      %p124 = por %p122, %p123
      %p125 = scmp.ne.s32.totalorder %s117, %s120
      %p126 = scmp.eq.s32.totalorder %s15, 0
      %p127 = por %p125, %p126
      %p128 = scmp.ne.s32.totalorder %s117, %s120
      %p129 = scmp.eq.s32.totalorder %s20, 3
      %p130 = por %p128, %p129
      %p131 = scmp.ne.s32.totalorder %s120, %s121
      %p132 = scmp.eq.s32.totalorder %s20, 0
      %p133 = por %p131, %p132
      %p134 = scmp.ne.s32.totalorder %s120, %s121
      %p135 = scmp.eq.s32.totalorder %s21, 3
      %p136 = por %p134, %p135
      %p138 = scmp.ne.s32.totalorder %s121, %s137
      %p139 = scmp.eq.s32.totalorder %s21, 0
      %p140 = por %p138, %p139
      %s141 = ssub.s32 %s22, %s34
      %p142 = scmp.eq.s32.totalorder %s141, 0
      %s144 = sadd.s32 %s143, 1
      %s145 = scalar_select %p142, %s143, %s144
      %p148 = pneg %p142
      %p149 = scmp.eq.s32.totalorder %s15, 3
      %p150 = por %p148, %p149
      %p151 = scmp.ne.s32.totalorder %s143, %s146
      %p152 = scmp.eq.s32.totalorder %s15, 0
      %p153 = por %p151, %p152
      %p154 = scmp.ne.s32.totalorder %s143, %s146
      %p155 = scmp.eq.s32.totalorder %s20, 3
      %p156 = por %p154, %p155
      %p157 = scmp.ne.s32.totalorder %s146, %s147
      %p158 = scmp.eq.s32.totalorder %s20, 0
      %p159 = por %p157, %p158
      %p160 = scmp.ne.s32.totalorder %s146, %s147
      %p161 = scmp.eq.s32.totalorder %s21, 3
      %p162 = por %p160, %p161
      %p164 = scmp.ne.s32.totalorder %s147, %s163
      %p165 = scmp.eq.s32.totalorder %s21, 0
      %p166 = por %p164, %p165
      %s167 = sadd.s32 %s22, 1
      %s168 = sadd.s32 %s34, 1
      %s169 = ssub.s32 %s23, %s30
      %s170 = ssub.s32 %s167, %s168
      %s171 = sor.u32 %s169, %s170
      %p172 = scmp.eq.s32.totalorder %s171, 0
      %s174 = sadd.s32 %s173, 1
      %s175 = scalar_select %p172, %s173, %s174
      %p178 = pneg %p172
      %p179 = scmp.eq.s32.totalorder %s15, 3
      %p180 = por %p178, %p179
      %p181 = scmp.ne.s32.totalorder %s173, %s176
      %p182 = scmp.eq.s32.totalorder %s15, 0
      %p183 = por %p181, %p182
      %p184 = scmp.ne.s32.totalorder %s173, %s176
      %p185 = scmp.eq.s32.totalorder %s20, 3
      %p186 = por %p184, %p185
      %p187 = scmp.ne.s32.totalorder %s176, %s177
      %p188 = scmp.eq.s32.totalorder %s20, 0
      %p189 = por %p187, %p188
      %p190 = scmp.ne.s32.totalorder %s176, %s177
      %p191 = scmp.eq.s32.totalorder %s21, 3
      %p192 = por %p190, %p191
      %p194 = scmp.ne.s32.totalorder %s177, %s193
      %p195 = scmp.eq.s32.totalorder %s21, 0
      %p196 = por %p194, %p195
      %p197 = scmp.le.s32.totalorder 1, %s15
      %p198 = scmp.lt.s32.totalorder %s15, 5
      %p199 = pnand %p197, %p198
      %p200 = pneg %p199
      // Predicated region
      $region9: #{bandsplit_forward.3} parent=5 // pred_check
        _
      $region10: #{bandsplit_forward.3} parent=5 // pred_check_branch
        %202 = sbr.rel (%p199) target = $region12
      $region11: #{bandsplit_forward.3} parent=5 // pred_region
        %s203 = ssub.s32 %s15, 1
      $region12: #{bandsplit_forward.3} parent=5 // pred_fallthru
        _
      %p204 = scmp.lt.s32.totalorder %s15, 4
      // Predicated region
      $region13: #{bandsplit_forward.3} parent=5 // pred_check
        %p205 = pneg %p204
      $region14: #{bandsplit_forward.3} parent=5 // pred_check_branch
        %207 = sbr.rel (%p205) target = $region16
      $region15: #{bandsplit_forward.3} parent=5 // pred_region
        // Predicated region
        $region17: #{bandsplit_forward.3} parent=15 // pred_check
          %p208 = pneg %p49
        $region18: #{bandsplit_forward.3} parent=15 // pred_check_branch
          %210 = sbr.rel (%p208) target = $region20
        $region19: #{bandsplit_forward.3} parent=15 // pred_region
          %p211 = scmp.lt.s32.totalorder %s23, 1
          %s212 = scalar_select %p211, %s23, 1
          %p213 = scmp.lt.s32.totalorder %s22, 1
          %s214 = scalar_select %p213, %s22, 1
          %s215 = smul.addr %s214, 3
          %s216 = smul.addr %s212, 6
          %s217 = sadd.s32 %s215, %s216
          %s218 = smul.addr %s217, 8
          %s219 = scalar_lea.vmem %s0, %s218
        $region20: #{bandsplit_forward.3} parent=15 // pred_fallthru
          _
        // Predicated region
        $region21: #{bandsplit_forward.3} parent=15 // pred_check
          %p220 = pneg %p75
        $region22: #{bandsplit_forward.3} parent=15 // pred_check_branch
          %222 = sbr.rel (%p220) target = $region24
        $region23: #{bandsplit_forward.3} parent=15 // pred_region
          %p223 = scmp.lt.s32.totalorder %s22, 1
          %s224 = scalar_select %p223, %s22, 1
          %s225 = smul.addr %s224, 3
          %s226 = smul.addr %s225, 8
          %s227 = scalar_lea.vmem %s1, %s226
        $region24: #{bandsplit_forward.3} parent=15 // pred_fallthru
          _
        // Predicated region
        $region25: #{bandsplit_forward.3} parent=15 // pred_check
          %p228 = pneg %p101
        $region26: #{bandsplit_forward.3} parent=15 // pred_check_branch
          %230 = sbr.rel (%p228) target = $region28
        $region27: #{bandsplit_forward.3} parent=15 // pred_region
          %p231 = scmp.lt.s32.totalorder %s22, 1
          %s232 = scalar_select %p231, %s22, 1
          %s233 = smul.addr %s232, 3
          %s234 = smul.addr %s233, 8
          %s235 = scalar_lea.vmem %s2, %s234
        $region28: #{bandsplit_forward.3} parent=15 // pred_fallthru
          _
        // Predicated region
        $region29: #{bandsplit_forward.3} parent=15 // pred_check
          %p236 = pneg %p127
        $region30: #{bandsplit_forward.3} parent=15 // pred_check_branch
          %238 = sbr.rel (%p236) target = $region32
        $region31: #{bandsplit_forward.3} parent=15 // pred_region
          %p239 = scmp.lt.s32.totalorder %s22, 1
          %s240 = scalar_select %p239, %s22, 1
          %s241 = smul.addr %s240, 16
          %s242 = smul.addr %s241, 8
          %s243 = scalar_lea.vmem %s3, %s242
        $region32: #{bandsplit_forward.3} parent=15 // pred_fallthru
          _
        // Predicated region
        $region33: #{bandsplit_forward.3} parent=15 // pred_check
          %p244 = pneg %p153
        $region34: #{bandsplit_forward.3} parent=15 // pred_check_branch
          %246 = sbr.rel (%p244) target = $region36
        $region35: #{bandsplit_forward.3} parent=15 // pred_region
          %p247 = scmp.lt.s32.totalorder %s22, 1
          %s248 = scalar_select %p247, %s22, 1
          %s249 = scalar_lea.vmem %s4, %s248
        $region36: #{bandsplit_forward.3} parent=15 // pred_fallthru
          _
      $region16: #{bandsplit_forward.3} parent=5 // pred_fallthru
        _
      %p250 = scmp.le.s32.totalorder 1, %s15
      %p251 = scmp.lt.s32.totalorder %s15, 5
      %p252 = pnand %p250, %p251
      %p253 = pneg %p252
      // Predicated region
      $region37: #{bandsplit_forward.3} parent=5 // pred_check
        _
      $region38: #{bandsplit_forward.3} parent=5 // pred_check_branch
        %255 = sbr.rel (%p252) target = $region40
      $region39: #{bandsplit_forward.3} parent=5 // pred_region
        %s256 = ssub.s32 %s15, 1
        %p257 = scmp.lt.s32.totalorder %s25, 1
        %s258 = scalar_select %p257, %s25, 1
        %p259 = scmp.lt.s32.totalorder %s24, 1
        %s260 = scalar_select %p259, %s24, 1
        %s261 = smul.addr %s260, 3
        %s262 = smul.addr %s258, 6
        %s263 = sadd.s32 %s261, %s262
        %s264 = smul.addr %s263, 8
        %s265 = scalar_lea.vmem %s0, %s264
        %p266 = pneg %p55
        %p267 = pneg %p52
        %p268 = scmp.lt.s32.totalorder %s24, 1
        %s269 = scalar_select %p268, %s24, 1
        %s270 = smul.addr %s269, 3
        %s271 = smul.addr %s270, 8
        %s272 = scalar_lea.vmem %s1, %s271
        %p273 = pneg %p81
        %p274 = pneg %p78
        %p275 = scmp.lt.s32.totalorder %s24, 1
        %s276 = scalar_select %p275, %s24, 1
        %s277 = smul.addr %s276, 3
        %s278 = smul.addr %s277, 8
        %s279 = scalar_lea.vmem %s2, %s278
        %p280 = pneg %p107
        %p281 = pneg %p104
        %p282 = scmp.lt.s32.totalorder %s24, 1
        %s283 = scalar_select %p282, %s24, 1
        %s284 = smul.addr %s283, 16
        %s285 = smul.addr %s284, 8
        %s286 = scalar_lea.vmem %s3, %s285
        %p287 = pneg %p133
        %p288 = pneg %p130
        %p289 = scmp.lt.s32.totalorder %s24, 1
        %s290 = scalar_select %p289, %s24, 1
        %s291 = scalar_lea.vmem %s4, %s290
        %p292 = pneg %p159
        %p293 = pneg %p156
        %p294 = pneg %p189
        %p295 = pneg %p186
        %s296 = sand.u32 %s176, 1
        %s297 = scalar_lea.sflag [#allocation3], %s296
        %s298 = sand.u32 %s176, 1
        %s299 = smul.addr %s298, 128
        %s300 = scalar_lea.vmem [#allocation2], %s299
        %p301 = scmp.lt.s32.totalorder %s25, 1
        %s302 = scalar_select %p301, %s25, 1
        %p303 = scmp.lt.s32.totalorder %s24, 1
        %s304 = scalar_select %p303, %s24, 1
        %s305 = smul.addr %s304, 3
        %s306 = smul.addr %s302, 6
        %s307 = sadd.s32 %s305, %s306
        %s308 = smul.addr %s307, 8
        %s309 = scalar_lea.vmem %s0, %s308
        %p310 = scmp.lt.s32.totalorder %s24, 1
        %s311 = scalar_select %p310, %s24, 1
        %s312 = smul.addr %s311, 3
        %s313 = smul.addr %s312, 8
        %s314 = scalar_lea.vmem %s1, %s313
        %p315 = scmp.lt.s32.totalorder %s24, 1
        %s316 = scalar_select %p315, %s24, 1
        %s317 = smul.addr %s316, 3
        %s318 = smul.addr %s317, 8
        %s319 = scalar_lea.vmem %s2, %s318
        %p320 = scmp.lt.s32.totalorder %s24, 1
        %s321 = scalar_select %p320, %s24, 1
        %s322 = smul.addr %s321, 16
        %s323 = smul.addr %s322, 8
        %s324 = scalar_lea.vmem %s3, %s323
        %p325 = scmp.lt.s32.totalorder %s24, 1
        %s326 = scalar_select %p325, %s24, 1
        %s327 = scalar_lea.vmem %s4, %s326
        %s328 = sadd.s32 %s24, 1
        %v329 = vld [vmem:[%s309] sm:$0xff]
        %v330 = vld [vmem:[%s309 + $0x8] sm:$0xff]
        %v331 = vld [vmem:[%s309 + $0x10] sm:$0xff]
        %v332 = vadd.f32 %v329, %v330
        %v333 = vadd.f32 %v332, %v331
        %334 = vadd.xlane.f32.xlu0 %v333
        %v335 = vpop.xlane.xlu0 %334
        %v336 = vrot.slane %v335, 4
        %v337 = vadd.f32 %v335, %v336
        %v338 = vrot.slane %v337, 2
        %v339 = vadd.f32 %v337, %v338
        %v340 = vrot.slane %v339, 1
        %v341 = vadd.f32 %v339, %v340
        %s342 = vtos %v341
        %v343 = vmul.f32 %v329, %v329
        %v344 = vmul.f32 %v330, %v330
        %v345 = vmul.f32 %v331, %v331
        %v346 = vadd.f32 %v343, %v344
        %v347 = vadd.f32 %v346, %v345
        %348 = vadd.xlane.f32.xlu0 %v347
        %v349 = vpop.xlane.xlu0 %348
        %v350 = vrot.slane %v349, 4
        %v351 = vadd.f32 %v349, %v350
        %v352 = vrot.slane %v351, 2
        %v353 = vadd.f32 %v351, %v352
        %v354 = vrot.slane %v353, 1
        %v355 = vadd.f32 %v353, %v354
        %s356 = vtos %v355
        %s357 = smul.f32 %s342, 0.00032552084
        %s358 = smul.f32 %s356, 0.00032552084
        %s359 = smul.f32 %s357, %s357
        %s360 = ssub.f32 %s358, %s359
        %s361 = sadd.f32 %s360, 1e-05
        %v362 = vstv %s361
        %v363 = vrsqrt.pop %v362
        %v364 = vmul.f32 %v363, %v362
        %v365 = vmul.f32 %v364, %v363
        %v366 = vmul.f32 0.5, %v365
        %v367 = vsub.f32 1.5, %v366
        %v368 = vmul.f32 %v363, %v367
        %vm369 = vweird.f32 %v362
        %vm370 = vweird.f32 %v363
        %vm371 = vmor %vm369, %vm370
        %v372 = vsel %vm371, %v363, %v368
        %s373 = vtos %v372
        %v374 = vstv %s357
        %v375 = vsub.f32 %v329, %v374
        %v376 = vsub.f32 %v330, %v374
        %v377 = vsub.f32 %v331, %v374
        %v378 = vstv %s373
        %v379 = vmul.f32 %v375, %v378
        %v380 = vmul.f32 %v376, %v378
        %v381 = vmul.f32 %v377, %v378
        %v382 = vld [vmem:[%s314] sm:$0xff]
        %v383 = vld [vmem:[%s314 + $0x8] sm:$0xff]
        %v384 = vld [vmem:[%s314 + $0x10] sm:$0xff]
        %v385 = vmul.f32 %v379, %v382
        %v386 = vmul.f32 %v380, %v383
        %v387 = vmul.f32 %v381, %v384
        %v388 = vld [vmem:[%s319] sm:$0xff]
        %v389 = vld [vmem:[%s319 + $0x8] sm:$0xff]
        %v390 = vld [vmem:[%s319 + $0x10] sm:$0xff]
        %v391 = vadd.f32 %v385, %v388
        %v392 = vadd.f32 %v386, %v389
        %v393 = vadd.f32 %v387, %v390
        %v394 = vld [vmem:[%s324] sm:$0xff]
        %v395 = vld [vmem:[%s324 + $0x8] sm:$0xff]
        %v396 = vld [vmem:[%s324 + $0x10] sm:$0xff]
        %v397 = vld [vmem:[%s324 + $0x18] sm:$0xff]
        %v398 = vld [vmem:[%s324 + $0x20] sm:$0xff]
        %v399 = vld [vmem:[%s324 + $0x28] sm:$0xff]
        %v400 = vld [vmem:[%s324 + $0x30] sm:$0xff]
        %v401 = vld [vmem:[%s324 + $0x38] sm:$0xff]
        %v402 = vld [vmem:[%s324 + $0x40] sm:$0xff]
        %v403 = vld [vmem:[%s324 + $0x48] sm:$0xff]
        %v404 = vld [vmem:[%s324 + $0x50] sm:$0xff]
        %v405 = vld [vmem:[%s324 + $0x58] sm:$0xff]
        %v406 = vld [vmem:[%s324 + $0x60] sm:$0xff]
        %v407 = vld [vmem:[%s324 + $0x68] sm:$0xff]
        %v408 = vld [vmem:[%s324 + $0x70] sm:$0xff]
        %v409 = vld [vmem:[%s324 + $0x78] sm:$0xff]
        %v410 = vld [vmem:[%s327] sm:$0x1]
        %v412 = vperm.slane %v410, 0
        %414 = vxpose.xlu0.b32.start [1/16] %v391, 128
        %415 = vxpose.xlu0.b32.cont [2/16] %v392, 128
        %416 = vxpose.xlu0.b32.cont [3/16] %v393, 128
        %417 = vxpose.xlu0.b32.cont [4/16] 0.0, 128
        %418 = vxpose.xlu0.b32.cont [5/16] 0.0, 128
        %419 = vxpose.xlu0.b32.cont [6/16] 0.0, 128
        %420 = vxpose.xlu0.b32.cont [7/16] 0.0, 128
        %421 = vxpose.xlu0.b32.cont [8/16] 0.0, 128
        %422 = vxpose.xlu0.b32.cont [9/16] 0.0, 128
        %423 = vxpose.xlu0.b32.cont [10/16] 0.0, 128
        %424 = vxpose.xlu0.b32.cont [11/16] 0.0, 128
        %425 = vxpose.xlu0.b32.cont [12/16] 0.0, 128
        %426 = vxpose.xlu0.b32.cont [13/16] 0.0, 128
        %427 = vxpose.xlu0.b32.cont [14/16] 0.0, 128
        %428 = vxpose.xlu0.b32.cont [15/16] 0.0, 128
        %429 = vxpose.xlu0.b32.end [16/16] 0.0, 128
        %v430 = vpop.trf.xlu0
        %v431 = vpop.trf.xlu0
        %v432 = vpop.trf.xlu0
        %v433 = vpop.trf.xlu0
        %v434 = vpop.trf.xlu0
        %v435 = vpop.trf.xlu0
        %v436 = vpop.trf.xlu0
        %v437 = vpop.trf.xlu0
        %v438 = vpop.trf.xlu0
        %v439 = vpop.trf.xlu0
        %v440 = vpop.trf.xlu0
        %v441 = vpop.trf.xlu0
        %v442 = vpop.trf.xlu0
        %v443 = vpop.trf.xlu0
        %v444 = vpop.trf.xlu0
        %v445 = vpop.trf.xlu0
        %vm446 = vcmask 195584
        %v448 = vsel %vm446, %v430, 0
        %v451 = vsel %vm446, %v431, 0
        %v454 = vsel %vm446, %v432, 0
        %v457 = vsel %vm446, %v433, 0
        %v460 = vsel %vm446, %v434, 0
        %v463 = vsel %vm446, %v435, 0
        %v466 = vsel %vm446, %v436, 0
        %v469 = vsel %vm446, %v437, 0
        %v472 = vsel %vm446, %v438, 0
        %v475 = vsel %vm446, %v439, 0
        %v478 = vsel %vm446, %v440, 0
        %v481 = vsel %vm446, %v441, 0
        %v484 = vsel %vm446, %v442, 0
        %v487 = vsel %vm446, %v443, 0
        %v490 = vsel %vm446, %v444, 0
        %v493 = vsel %vm446, %v445, 0
        %v496 = vsel %vm446, %v394, 0
        %v499 = vsel %vm446, %v395, 0
        %v502 = vsel %vm446, %v396, 0
        %v505 = vsel %vm446, %v397, 0
        %v508 = vsel %vm446, %v398, 0
        %v511 = vsel %vm446, %v399, 0
        %v514 = vsel %vm446, %v400, 0
        %v517 = vsel %vm446, %v401, 0
        %v520 = vsel %vm446, %v402, 0
        %v523 = vsel %vm446, %v403, 0
        %v526 = vsel %vm446, %v404, 0
        %v529 = vsel %vm446, %v405, 0
        %v532 = vsel %vm446, %v406, 0
        %v535 = vsel %vm446, %v407, 0
        %v538 = vsel %vm446, %v408, 0
        %v541 = vsel %vm446, %v409, 0
        %543 = vmatpush.xpose.msra.mxu0 %v541
        %544 = vmatpush.xpose.msra.mxu0 %v538
        %545 = vmatpush.xpose.msra.mxu0 %v535
        %546 = vmatpush.xpose.msra.mxu0 %v532
        %547 = vmatpush.xpose.msra.mxu0 %v529
        %548 = vmatpush.xpose.msra.mxu0 %v526
        %549 = vmatpush.xpose.msra.mxu0 %v523
        %550 = vmatpush.xpose.msra.mxu0 %v520
        %551 = vmatpush.xpose.msra.mxu0 %v517
        %552 = vmatpush.xpose.msra.mxu0 %v514
        %553 = vmatpush.xpose.msra.mxu0 %v511
        %554 = vmatpush.xpose.msra.mxu0 %v508
        %555 = vmatpush.xpose.msra.mxu0 %v505
        %556 = vmatpush.xpose.msra.mxu0 %v502
        %557 = vmatpush.xpose.msra.mxu0 %v499
        %558 = vmatpush.xpose.msra.mxu0 %v496
        %559 = vmatmul.f32.gmra.mxu0 %v448
        %v560 = vpop.f32.mrf.mxu0
        %v561 = vadd.f32 %v412, %v560
        %562 = vmatmul.f32.gmra.mxu0 %v451
        %v563 = vpop.f32.mrf.mxu0
        %v564 = vadd.f32 %v412, %v563
        %565 = vmatmul.f32.gmra.mxu0 %v454
        %v566 = vpop.f32.mrf.mxu0
        %v567 = vadd.f32 %v412, %v566
        %568 = vmatmul.f32.gmra.mxu0 %v457
        %v569 = vpop.f32.mrf.mxu0
        %v570 = vadd.f32 %v412, %v569
        %571 = vmatmul.f32.gmra.mxu0 %v460
        %v572 = vpop.f32.mrf.mxu0
        %v573 = vadd.f32 %v412, %v572
        %574 = vmatmul.f32.gmra.mxu0 %v463
        %v575 = vpop.f32.mrf.mxu0
        %v576 = vadd.f32 %v412, %v575
        %577 = vmatmul.f32.gmra.mxu0 %v466
        %v578 = vpop.f32.mrf.mxu0
        %v579 = vadd.f32 %v412, %v578
        %580 = vmatmul.f32.gmra.mxu0 %v469
        %v581 = vpop.f32.mrf.mxu0
        %v582 = vadd.f32 %v412, %v581
        %583 = vmatmul.f32.gmra.mxu0 %v472
        %v584 = vpop.f32.mrf.mxu0
        %v585 = vadd.f32 %v412, %v584
        %586 = vmatmul.f32.gmra.mxu0 %v475
        %v587 = vpop.f32.mrf.mxu0
        %v588 = vadd.f32 %v412, %v587
        %589 = vmatmul.f32.gmra.mxu0 %v478
        %v590 = vpop.f32.mrf.mxu0
        %v591 = vadd.f32 %v412, %v590
        %592 = vmatmul.f32.gmra.mxu0 %v481
        %v593 = vpop.f32.mrf.mxu0
        %v594 = vadd.f32 %v412, %v593
        %595 = vmatmul.f32.gmra.mxu0 %v484
        %v596 = vpop.f32.mrf.mxu0
        %v597 = vadd.f32 %v412, %v596
        %598 = vmatmul.f32.gmra.mxu0 %v487
        %v599 = vpop.f32.mrf.mxu0
        %v600 = vadd.f32 %v412, %v599
        %601 = vmatmul.f32.gmra.mxu0 %v490
        %v602 = vpop.f32.mrf.mxu0
        %v603 = vadd.f32 %v412, %v602
        %604 = vmatmul.f32.gmra.mxu0 %v493
        %v605 = vpop.f32.mrf.mxu0
        %v606 = vadd.f32 %v412, %v605
        %607 = vdwg.mxu0
        %608 = vst [vmem:[%s300] sm:$0xff] %v561
        %609 = vst [vmem:[%s300 + $0x8] sm:$0xff] %v564
        %610 = vst [vmem:[%s300 + $0x10] sm:$0xff] %v567
        %611 = vst [vmem:[%s300 + $0x18] sm:$0xff] %v570
        %612 = vst [vmem:[%s300 + $0x20] sm:$0xff] %v573
        %613 = vst [vmem:[%s300 + $0x28] sm:$0xff] %v576
        %614 = vst [vmem:[%s300 + $0x30] sm:$0xff] %v579
        %615 = vst [vmem:[%s300 + $0x38] sm:$0xff] %v582
        %616 = vst [vmem:[%s300 + $0x40] sm:$0xff] %v585
        %617 = vst [vmem:[%s300 + $0x48] sm:$0xff] %v588
        %618 = vst [vmem:[%s300 + $0x50] sm:$0xff] %v591
        %619 = vst [vmem:[%s300 + $0x58] sm:$0xff] %v594
        %620 = vst [vmem:[%s300 + $0x60] sm:$0xff] %v597
        %621 = vst [vmem:[%s300 + $0x68] sm:$0xff] %v600
        %622 = vst [vmem:[%s300 + $0x70] sm:$0xff] %v603
        %623 = vst [vmem:[%s300 + $0x78] sm:$0xff] %v606
        %s624 = sand.u32 %s176, 1
        %s625 = scalar_lea.sflag [#allocation3], %s624
        %s626 = sand.u32 %s176, 1
        %s627 = smul.addr %s626, 128
        %s628 = scalar_lea.vmem [#allocation2], %s627
        // Predicated region
        $region41: #{bandsplit_forward.3} parent=39 // pred_check
          %p629 = pneg %p186
        $region42: #{bandsplit_forward.3} parent=39 // pred_check_branch
          %631 = sbr.rel (%p629) target = $region44
        $region43: #{bandsplit_forward.3} parent=39 // pred_region
          %s632 = sadd.s32 %s24, 1
          %634 = vsyncadd %s625, 0
          %s635 = smul.addr %s632, 16
          %s636 = smul.addr %s25, 48
          %s637 = sadd.s32 %s635, %s636
          %s638 = smul.addr %s637, 8
          %s639 = scalar_lea.hbm %s6, %s638
          %s640 = sshll.u32 %s628, 4
          %s641 = int_to_ptr.vmem [resolvable:$true] %s640
          %s642 = sshll.u32 %s639, 4
          %s643 = int_to_ptr.hbm [resolvable:$true] %s642
          %648 = dma.vmem_to_hbm [thread:$0]  %s641, 2048, %s643, %s625, 128, 128, 8
        $region44: #{bandsplit_forward.3} parent=39 // pred_fallthru
          _
      $region40: #{bandsplit_forward.3} parent=5 // pred_fallthru
        _
      %p649 = scmp.le.s32.totalorder 2, %s15
      // Predicated region
      $region45: #{bandsplit_forward.3} parent=5 // pred_check
        %p650 = pneg %p649
      $region46: #{bandsplit_forward.3} parent=5 // pred_check_branch
        %652 = sbr.rel (%p650) target = $region48
      $region47: #{bandsplit_forward.3} parent=5 // pred_region
        %s653 = ssub.s32 %s15, 2
        // Predicated region
        $region49: #{bandsplit_forward.3} parent=47 // pred_check
          %p654 = pneg %p192
        $region50: #{bandsplit_forward.3} parent=47 // pred_check_branch
          %656 = sbr.rel (%p654) target = $region52
        $region51: #{bandsplit_forward.3} parent=47 // pred_region
          %s657 = sand.u32 %s177, 1
          %s658 = scalar_lea.sflag [#allocation3], %s657
          %s659 = sand.u32 %s177, 1
          %s660 = smul.addr %s659, 128
          %s661 = scalar_lea.vmem [#allocation2], %s660
          %663 = dma.done %s658, 2048
        $region52: #{bandsplit_forward.3} parent=47 // pred_fallthru
          _
      $region48: #{bandsplit_forward.3} parent=5 // pred_fallthru
        _
    $region6: #{bandsplit_forward.3} parent=1 // loop_footer
      %s19 = sadd.s32 1, %s15
    $region7: #{bandsplit_forward.3} parent=1 // loop_footer_branch
      %14 = sbr.rel target = $region3
    $region8: #{bandsplit_forward.3} parent=1 // loop_exit
      _
    %664 = vsyncpa [#allocation3], 1
    %s665 = scalar_lea.sflag [#allocation3], 1
    %666 = vsyncpa %s665, 1

</llo_original>
